<compile_context>
chip_gen: v7x
topology: tpu7x:2x2x1
jax: 0.10.0
libtpu: 0.0.40
codegen_flags: <defaults>
</compile_context>

<pallas_src>
import functools

import jax
import jax.numpy as jnp
from jax.experimental import pallas as pl
from jax.experimental.pallas import tpu as pltpu


# ---------------------------------------------------------------------------
# Tiling constants / helpers
# ---------------------------------------------------------------------------
_TM = 512                        # target dst-node rows per tile (sublane axis)
_TK = 1024                       # target src-node cols per tile (lane axis)
_LANE = 128                      # lane alignment (last dim)
_SUB = 32                        # sublane alignment (covers int8 pack=32, bf16=16)
_VMEM_LIMIT = 48 * 1024 * 1024   # explicit scoped VMEM; headroom on v7x's 64 MiB


def _round_up(x, m):
    return ((x + m - 1) // m) * m


def _choose_tile(dim, target, align):
    """Largest tile <= target that is a multiple of `align` and divides `dim`.
    `dim` is always pre-padded to a multiple of 128, so an aligned divisor
    always exists (worst case `align` itself)."""
    if dim <= target:
        return dim
    t = (target // align) * align
    while t >= align:
        if dim % t == 0:
            return t
        t -= align
    return dim


def _dst_tile(n_dst, target):
    """Dst tile, preferring >=2 tiles so the 'parallel' axis feeds both TCs."""
    return _choose_tile(n_dst, min(target, max(_SUB, n_dst // 2)), _SUB)


def _compiler_params():
    return pltpu.CompilerParams(
        dimension_semantics=("parallel", "arbitrary"),
        vmem_limit_bytes=_VMEM_LIMIT)


# ---------------------------------------------------------------------------
# Pallas kernels
# ---------------------------------------------------------------------------
def _gcn_hidden_kernel(mask_ref, h_ref, inv_ref, wt_ref, b_ref, o_ref, acc_ref,
                       *, tk):
    """One hidden GCN block: acc accumulates mask_i8 @ H (bf16 MXU, f32 acc)
    over the src axis; epilogue scales by 1/deg (mailbox mean), applies the
    NodeUpdate linear + bias + ReLU and stores the bf16 activation."""
    k = pl.program_id(1)
    src0 = pl.multiple_of(k * tk, tk)
    h_blk = h_ref[pl.ds(src0, tk), :]                       # resident H, sliced
    part = jnp.dot(mask_ref[...].astype(jnp.bfloat16), h_blk,
                   preferred_element_type=jnp.float32)

    @pl.when(k == 0)
    def _():
        acc_ref[...] = part                                 # no zero + add

    @pl.when(k > 0)
    def _():
        acc_ref[...] += part

    @pl.when(k == pl.num_programs(1) - 1)
    def _():
        agg = (acc_ref[...] * inv_ref[...]).astype(jnp.bfloat16)
        z = jnp.dot(agg, wt_ref[...],
                    preferred_element_type=jnp.float32) + b_ref[...]
        o_ref[...] = jnp.maximum(z, 0.0).astype(o_ref.dtype)


def _gcn_out_pred_kernel(mask_ref, h_ref, inv_ref, wt_ref, b_ref, xus_ref,
                         o_ref, acc_ref, *, tk):
    """Last GCN block fused with the velocity prediction.  The beta/gamma
    weights are concatenated into one lane-dense (f_hid, 2G) matrix; the kernel
    emits the lane-dense slab  z * [Ux_out | Sx_out]  (folded outside)."""
    k = pl.program_id(1)
    src0 = pl.multiple_of(k * tk, tk)
    h_blk = h_ref[pl.ds(src0, tk), :]
    part = jnp.dot(mask_ref[...].astype(jnp.bfloat16), h_blk,
                   preferred_element_type=jnp.float32)

    @pl.when(k == 0)
    def _():
        acc_ref[...] = part

    @pl.when(k > 0)
    def _():
        acc_ref[...] += part

    @pl.when(k == pl.num_programs(1) - 1)
    def _():
        agg = (acc_ref[...] * inv_ref[...]).astype(jnp.bfloat16)
        z = jnp.dot(agg, wt_ref[...],
                    preferred_element_type=jnp.float32) + b_ref[...]
        o_ref[...] = (z * xus_ref[...]).astype(o_ref.dtype)


# ---------------------------------------------------------------------------
# pallas_call wrappers
# ---------------------------------------------------------------------------
def gcn_hidden_layer(mask_i8, h_bf16, inv_deg, wt_bf16, b_f32, *, tm=_TM, tk=_TK):
    """relu(((mask @ h) * inv_deg) @ wt + b).  All operands pre-padded:
    mask (Nd, Ns) int8, h (Ns, Fi) bf16, inv_deg (Nd, 1) f32,
    wt (Fi, Fo) bf16, b (1, Fo) f32.  Returns (Nd, Fo) bf16."""
    n_dst, n_src = mask_i8.shape
    f_in = h_bf16.shape[1]
    f_out = wt_bf16.shape[1]
    tm = _dst_tile(n_dst, tm)
    tk = _choose_tile(n_src, tk, _LANE)
    grid = (n_dst // tm, n_src // tk)
    return pl.pallas_call(
        functools.partial(_gcn_hidden_kernel, tk=tk),
        out_shape=jax.ShapeDtypeStruct((n_dst, f_out), jnp.bfloat16),
        grid=grid,
        in_specs=[
            pl.BlockSpec((tm, tk), lambda i, k: (i, k)),       # int8 adjacency mask
            pl.BlockSpec((n_src, f_in), lambda i, k: (0, 0)),  # resident activations
            pl.BlockSpec((tm, 1), lambda i, k: (i, 0)),        # 1/deg per dst row
            pl.BlockSpec((f_in, f_out), lambda i, k: (0, 0)),  # resident W^T (bf16)
            pl.BlockSpec((1, f_out), lambda i, k: (0, 0)),     # resident bias (f32)
        ],
        out_specs=pl.BlockSpec((tm, f_out), lambda i, k: (i, 0)),
        scratch_shapes=[pltpu.VMEM((tm, f_in), jnp.float32)],
        compiler_params=_compiler_params(),
    )(mask_i8, h_bf16, inv_deg, wt_bf16, b_f32)


def gcn_out_pred_layer(mask_i8, h_bf16, inv_deg, wt_bf16, b_f32, xus_f32,
                       *, tm=_TM, tk=_TK):
    """Fused last layer + prediction slab:
    slab = (((mask @ h) * inv_deg) @ [Wb|Wg] + [bb|bg]) * [Ux_out|Sx_out]."""
    n_dst, n_src = mask_i8.shape
    f_in = h_bf16.shape[1]
    f_out = wt_bf16.shape[1]
    tm = _dst_tile(n_dst, tm)
    tk = _choose_tile(n_src, tk, _LANE)
    grid = (n_dst // tm, n_src // tk)
    return pl.pallas_call(
        functools.partial(_gcn_out_pred_kernel, tk=tk),
        out_shape=jax.ShapeDtypeStruct((n_dst, f_out), jnp.float32),
        grid=grid,
        in_specs=[
            pl.BlockSpec((tm, tk), lambda i, k: (i, k)),       # int8 adjacency mask
            pl.BlockSpec((n_src, f_in), lambda i, k: (0, 0)),  # resident hidden act
            pl.BlockSpec((tm, 1), lambda i, k: (i, 0)),        # 1/deg per dst row
            pl.BlockSpec((f_in, f_out), lambda i, k: (0, 0)),  # [Wb|Wg]^T (bf16)
            pl.BlockSpec((1, f_out), lambda i, k: (0, 0)),     # [bb|bg]
            pl.BlockSpec((tm, f_out), lambda i, k: (i, 0)),    # [Ux_out|Sx_out]
        ],
        out_specs=pl.BlockSpec((tm, f_out), lambda i, k: (i, 0)),
        scratch_shapes=[pltpu.VMEM((tm, f_in), jnp.float32)],
        compiler_params=_compiler_params(),
    )(mask_i8, h_bf16, inv_deg, wt_bf16, b_f32, xus_f32)


# ---------------------------------------------------------------------------
# One-time parameter / graph preparation
# ---------------------------------------------------------------------------
def prepare_params(params_raw, n_gene):
    """params_raw: list of (W (out,in), b (out,)) per NodeUpdate (PyTorch layout).
    Pre-transpose, lane-pad feature dims, cast weights to bf16.  The last layer
    keeps its natural [beta | gamma] column order (one lane-dense matmul)."""
    hidden = []
    for w, b in params_raw[:-1]:
        out_f, in_f = w.shape
        in_p, out_p = _round_up(in_f, _LANE), _round_up(out_f, _LANE)
        wt = jnp.zeros((in_p, out_p), jnp.float32)
        wt = wt.at[:in_f, :out_f].set(jnp.asarray(w).T)
        bp = jnp.zeros((1, out_p), jnp.float32).at[0, :out_f].set(jnp.asarray(b))
        hidden.append((wt.astype(jnp.bfloat16), bp))

    w_last, b_last = params_raw[-1]                       # (2G, F_hid), (2G,)
    out_f, in_f = w_last.shape
    in_p, out_p = _round_up(in_f, _LANE), _round_up(2 * n_gene, _LANE)
    wt = jnp.zeros((in_p, out_p), jnp.float32)
    wt = wt.at[:in_f, :2 * n_gene].set(jnp.asarray(w_last).T)
    bp = jnp.zeros((1, out_p), jnp.float32).at[0, :2 * n_gene].set(jnp.asarray(b_last))
    return hidden, (wt.astype(jnp.bfloat16), bp)


def prepare_adjacencies(masks):
    """masks: list of dense 0/1 (n_dst, n_src) block-adjacency masks.
    Pads node counts consistently to multiples of 128, casts masks to int8 ONCE
    and precomputes per-dst-row 1/deg (0 for padded / isolated rows)."""
    counts = [masks[0].shape[1]] + [m.shape[0] for m in masks]
    pads = [_round_up(c, _LANE) for c in counts]
    prepped = []
    for l, m in enumerate(masks):
        n_dst, n_src = m.shape
        pd, ps = pads[l + 1], pads[l]
        mp = jnp.zeros((pd, ps), jnp.float32).at[:n_dst, :n_src].set(jnp.asarray(m))
        deg = jnp.sum(mp, axis=1, keepdims=True)
        inv = jnp.where(deg > 0, 1.0 / jnp.maximum(deg, 1.0), 0.0).astype(jnp.float32)
        prepped.append((mp.astype(jnp.int8), inv))
    return prepped


# ---------------------------------------------------------------------------
# Forward (mirrors GCNNodeFlow.forward: dropout=0, test=False, concat=False)
# ---------------------------------------------------------------------------
def gcn_nodeflow_forward(prepped_params, prepped_adjs, x_u, x_s, x_u_out, x_s_out,
                         *, tm=_TM, tk=_TK):
    hidden_params, (wt_last, b_last) = prepped_params
    n_in, n_gene = x_u.shape
    n_out = x_u_out.shape[0]

    # Padded, lane-dense input activation H0 = [Ux | Sx].
    n_src0 = prepped_adjs[0][0].shape[1]
    f_in0 = hidden_params[0][0].shape[0] if hidden_params else wt_last.shape[0]
    h = jnp.zeros((n_src0, f_in0), jnp.bfloat16)
    h = h.at[:n_in, :n_gene].set(x_u.astype(jnp.bfloat16))
    h = h.at[:n_in, n_gene:2 * n_gene].set(x_s.astype(jnp.bfloat16))

    for (wt, b2), (mask, inv) in zip(hidden_params, prepped_adjs[:-1]):
        h = gcn_hidden_layer(mask, h, inv, wt, b2, tm=tm, tk=tk)

    mask, inv = prepped_adjs[-1]
    n_dst_pad = mask.shape[0]
    out_pad = wt_last.shape[1]
    xus = jnp.zeros((n_dst_pad, out_pad), jnp.float32)
    xus = xus.at[:n_out, :n_gene].set(x_u_out)
    xus = xus.at[:n_out, n_gene:2 * n_gene].set(x_s_out)

    slab = gcn_out_pred_layer(mask, h, inv, wt_last, b_last, xus, tm=tm, tk=tk)
    # pred = beta * Ux_out + gamma * Sx_out  (tiny lane-fold outside the kernel)
    return slab[:n_out, :n_gene] + slab[:n_out, n_gene:2 * n_gene]


def reference_forward(params_raw, masks, x_u, x_s, x_u_out, x_s_out):
    """Pure-JAX f32 reference of the same forward (mailbox mean as mask/deg)."""
    n_gene = x_u.shape[1]
    h = jnp.concatenate([x_u, x_s], axis=1)
    n_layers = len(params_raw)
    for i, ((w, b), m) in enumerate(zip(params_raw, masks)):
        a = m / jnp.maximum(jnp.sum(m, axis=1, keepdims=True), 1.0)
        h = (a @ h) @ w.T + b
        if i != n_layers - 1:
            h = jnp.maximum(h, 0.0)
    return h[:, :n_gene] * x_u_out + h[:, n_gene:2 * n_gene] * x_s_out


# ---------------------------------------------------------------------------
# Deterministic setup
# ---------------------------------------------------------------------------
def init_params(key, n_genes, layers):
    """Same shapes as GCNNodeFlow.__init__: Linear(2G, layers[0]), ...,
    Linear(layers[-1], 2G)."""
    dims = [n_genes * 2] + list(layers) + [n_genes * 2]
    params = []
    for i in range(len(dims) - 1):
        in_f, out_f = dims[i], dims[i + 1]
        key, kw, kb = jax.random.split(key, 3)
        bound = 1.0 / jnp.sqrt(jnp.float32(in_f))
        w = jax.random.uniform(kw, (out_f, in_f), jnp.float32, -bound, bound)
        b = jax.random.uniform(kb, (out_f,), jnp.float32, -bound, bound)
        params.append((w, b))
    return params


def make_block_mask(key, n_dst, n_src):
    """Random 0/1 block graph with >=1 in-neighbor per dst row (so the
    mailbox-mean reduction is well defined)."""
    mask = jax.random.bernoulli(key, p=0.5, shape=(n_dst, n_src)).astype(jnp.float32)
    return mask.at[:, 0].set(1.0)


if __name__ == "__main__":
    key = jax.random.PRNGKey(0)

    n_genes = 64           # n_gene  (2G = 128 -> lane-dense features)
    hidden_layers = [64]   # GCNNodeFlow default -> 2 NodeUpdate blocks
    n_nodes = 256          # nodes per NodeFlow layer (kept equal across layers)
    tm, tk = 128, 128      # small tiles so the demo exercises a real (2, 2) grid

    k_params, k_a0, k_a1, k_xu, k_xs, k_xuo, k_xso = jax.random.split(key, 7)

    params = init_params(k_params, n_genes, hidden_layers)
    prepped_params = prepare_params(params, n_genes)
    # NodeFlow has len(layers)+1 node layers -> len(params) blocks.
    masks = [make_block_mask(k_a0, n_nodes, n_nodes),
             make_block_mask(k_a1, n_nodes, n_nodes)]
    prepped_adjs = prepare_adjacencies(masks)   # int8 masks + 1/deg, prepared ONCE

    x_u = jax.random.normal(k_xu, (n_nodes, n_genes), jnp.float32)       # Ux_sz layer 0
    x_s = jax.random.normal(k_xs, (n_nodes, n_genes), jnp.float32)       # Sx_sz layer 0
    x_u_out = jax.random.normal(k_xuo, (n_nodes, n_genes), jnp.float32)  # Ux_sz layer -1
    x_s_out = jax.random.normal(k_xso, (n_nodes, n_genes), jnp.float32)  # Sx_sz layer -1

    fwd = jax.jit(functools.partial(gcn_nodeflow_forward, tm=tm, tk=tk))
    pred = fwd(prepped_params, prepped_adjs, x_u, x_s, x_u_out, x_s_out)
    pred = jax.block_until_ready(pred)

    ref = reference_forward(params, masks, x_u, x_s, x_u_out, x_s_out)
    assert pred.shape == (n_nodes, n_genes)
    # Exact int8 mask + f32 deg scale; remaining error is bf16 weights/activations.
    assert jnp.allclose(pred, ref, atol=2e-2, rtol=2e-2), \
        float(jnp.max(jnp.abs(pred - ref)))

    print("KERNEL_OK")
</pallas_src>

<mosaic_0001>
module attributes {stable_mosaic.version = 11 : i64} {
  func.func @_gcn_out_pred_kernel(%arg0: i32, %arg1: i32, %arg2: memref<128x128xi8, #tpu.memory_space<vmem>>, %arg3: memref<256x128xbf16, #tpu.memory_space<vmem>>, %arg4: memref<128x1xf32, #tpu.memory_space<vmem>>, %arg5: memref<128x128xbf16, #tpu.memory_space<vmem>>, %arg6: memref<1x128xf32, #tpu.memory_space<vmem>>, %arg7: memref<128x128xf32, #tpu.memory_space<vmem>>, %arg8: memref<128x128xf32, #tpu.memory_space<vmem>>, %arg9: memref<128x128xf32, #tpu.memory_space<vmem>>) attributes {dimension_semantics = [#tpu.dimension_semantics<parallel>, #tpu.dimension_semantics<arbitrary>], iteration_bounds = array<i64: 2, 2>, scalar_prefetch = 0 : i64, scratch_operands = 1 : i64, tpu.core_type = #tpu.core_type<tc>, window_params = [{transform_indices = @transform_0, window_bounds = array<i64: 128, 128>}, {pipeline_mode = #tpu.pipeline_mode<synchronous>, transform_indices = @transform_1, window_bounds = array<i64: 256, 128>}, {transform_indices = @transform_2, window_bounds = array<i64: 128, 1>}, {pipeline_mode = #tpu.pipeline_mode<synchronous>, transform_indices = @transform_3, window_bounds = array<i64: 128, 128>}, {pipeline_mode = #tpu.pipeline_mode<synchronous>, transform_indices = @transform_4, window_bounds = array<i64: 1, 128>}, {transform_indices = @transform_5, window_bounds = array<i64: 128, 128>}, {transform_indices = @transform_6, window_bounds = array<i64: 128, 128>}]} {
    %c128_i32 = arith.constant 128 : i32
    %0 = arith.muli %arg1, %c128_i32 : i32
    %1 = tpu.assume_multiple %0, 128 : i32
    %2 = arith.index_cast %1 : i32 to index
    %c0 = arith.constant 0 : index
    %3 = vector.load %arg3[%2, %c0] : memref<256x128xbf16, #tpu.memory_space<vmem>>, vector<128x128xbf16>
    %c0_0 = arith.constant 0 : index
    %c0_1 = arith.constant 0 : index
    %4 = vector.load %arg2[%c0_0, %c0_1] : memref<128x128xi8, #tpu.memory_space<vmem>>, vector<128x128xi8>
    %5 = arith.sitofp %4 : vector<128x128xi8> to vector<128x128xbf16>
    %cst = arith.constant dense<0.000000e+00> : vector<128x128xf32>
    %6 = tpu.matmul %5, %3, %cst {dimension_numbers = #tpu.dot_dimension_numbers<[1], [0], [0], [1], [0, 0, 1, 1], [], []>} : vector<128x128xbf16>, vector<128x128xbf16>, vector<128x128xf32> -> vector<128x128xf32>
    %c0_i32 = arith.constant 0 : i32
    %7 = arith.cmpi eq, %arg1, %c0_i32 : i32
    %8 = arith.extui %7 : i1 to i32
    %c0_i32_2 = arith.constant 0 : i32
    %9 = arith.cmpi ne, %8, %c0_i32_2 : i32
    scf.if %9 {
      %c0_6 = arith.constant 0 : index
      %c0_7 = arith.constant 0 : index
      %16 = vector.load %arg9[%c0_6, %c0_7] : memref<128x128xf32, #tpu.memory_space<vmem>>, vector<128x128xf32>
      tpu.vector_store %arg9[%c0_6, %c0_7], %6 {strides = array<i32>} : memref<128x128xf32, #tpu.memory_space<vmem>>, vector<128x128xf32>,
    } else {
    }
    %c0_i32_3 = arith.constant 0 : i32
    %10 = arith.cmpi sgt, %arg1, %c0_i32_3 : i32
    %11 = arith.extui %10 : i1 to i32
    %c0_i32_4 = arith.constant 0 : i32
    %12 = arith.cmpi ne, %11, %c0_i32_4 : i32
    scf.if %12 {
      %c0_6 = arith.constant 0 : index
      %c0_7 = arith.constant 0 : index
      %16 = vector.load %arg9[%c0_6, %c0_7] : memref<128x128xf32, #tpu.memory_space<vmem>>, vector<128x128xf32>
      %17 = arith.addf %16, %6 : vector<128x128xf32>
      %c0_8 = arith.constant 0 : index
      %c0_9 = arith.constant 0 : index
      %18 = vector.load %arg9[%c0_8, %c0_9] : memref<128x128xf32, #tpu.memory_space<vmem>>, vector<128x128xf32>
      tpu.vector_store %arg9[%c0_8, %c0_9], %17 {strides = array<i32>} : memref<128x128xf32, #tpu.memory_space<vmem>>, vector<128x128xf32>,
    } else {
    }
    %c1_i32 = arith.constant 1 : i32
    %13 = arith.cmpi eq, %arg1, %c1_i32 : i32
    %14 = arith.extui %13 : i1 to i32
    %c0_i32_5 = arith.constant 0 : i32
    %15 = arith.cmpi ne, %14, %c0_i32_5 : i32
    scf.if %15 {
      %c0_6 = arith.constant 0 : index
      %c0_7 = arith.constant 0 : index
      %16 = vector.load %arg9[%c0_6, %c0_7] : memref<128x128xf32, #tpu.memory_space<vmem>>, vector<128x128xf32>
      %c0_8 = arith.constant 0 : index
      %c0_9 = arith.constant 0 : index
      %17 = vector.load %arg4[%c0_8, %c0_9] : memref<128x1xf32, #tpu.memory_space<vmem>>, vector<128x1xf32>
      %18 = vector.broadcast %17 : vector<128x1xf32> to vector<128x128xf32>
      %19 = arith.mulf %16, %18 : vector<128x128xf32>
      %20 = arith.truncf %19 : vector<128x128xf32> to vector<128x128xbf16>
      %c0_10 = arith.constant 0 : index
      %c0_11 = arith.constant 0 : index
      %21 = vector.load %arg5[%c0_10, %c0_11] : memref<128x128xbf16, #tpu.memory_space<vmem>>, vector<128x128xbf16>
      %cst_12 = arith.constant dense<0.000000e+00> : vector<128x128xf32>
      %22 = tpu.matmul %20, %21, %cst_12 {dimension_numbers = #tpu.dot_dimension_numbers<[1], [0], [0], [1], [0, 0, 1, 1], [], []>} : vector<128x128xbf16>, vector<128x128xbf16>, vector<128x128xf32> -> vector<128x128xf32>
      %c0_13 = arith.constant 0 : index
      %c0_14 = arith.constant 0 : index
      %23 = vector.load %arg6[%c0_13, %c0_14] : memref<1x128xf32, #tpu.memory_space<vmem>>, vector<1x128xf32>
      %24 = vector.broadcast %23 : vector<1x128xf32> to vector<128x128xf32>
      %25 = arith.addf %22, %24 : vector<128x128xf32>
      %c0_15 = arith.constant 0 : index
      %c0_16 = arith.constant 0 : index
      %26 = vector.load %arg7[%c0_15, %c0_16] : memref<128x128xf32, #tpu.memory_space<vmem>>, vector<128x128xf32>
      %27 = arith.mulf %25, %26 : vector<128x128xf32>
      %c0_17 = arith.constant 0 : index
      %c0_18 = arith.constant 0 : index
      %28 = vector.load %arg8[%c0_17, %c0_18] : memref<128x128xf32, #tpu.memory_space<vmem>>, vector<128x128xf32>
      tpu.vector_store %arg8[%c0_17, %c0_18], %27 {strides = array<i32>} : memref<128x128xf32, #tpu.memory_space<vmem>>, vector<128x128xf32>,
    } else {
    }
    return
  }
  func.func @transform_0(%arg0: i32, %arg1: i32) -> (i32, i32) {
    %c0_i32 = arith.constant 0 : i32
    return %arg0, %arg1 : i32, i32
  }
  func.func @transform_1(%arg0: i32, %arg1: i32) -> (i32, i32) {
    %c0_i32 = arith.constant 0 : i32
    %c0_i32_0 = arith.constant 0 : i32
    %c0_i32_1 = arith.constant 0 : i32
    return %c0_i32, %c0_i32_0 : i32, i32
  }
  func.func @transform_2(%arg0: i32, %arg1: i32) -> (i32, i32) {
    %c0_i32 = arith.constant 0 : i32
    %c0_i32_0 = arith.constant 0 : i32
    return %arg0, %c0_i32 : i32, i32
  }
  func.func @transform_3(%arg0: i32, %arg1: i32) -> (i32, i32) {
    %c0_i32 = arith.constant 0 : i32
    %c0_i32_0 = arith.constant 0 : i32
    %c0_i32_1 = arith.constant 0 : i32
    return %c0_i32, %c0_i32_0 : i32, i32
  }
  func.func @transform_4(%arg0: i32, %arg1: i32) -> (i32, i32) {
    %c0_i32 = arith.constant 0 : i32
    %c0_i32_0 = arith.constant 0 : i32
    %c0_i32_1 = arith.constant 0 : i32
    return %c0_i32, %c0_i32_0 : i32, i32
  }
  func.func @transform_5(%arg0: i32, %arg1: i32) -> (i32, i32) {
    %c0_i32 = arith.constant 0 : i32
    %c0_i32_0 = arith.constant 0 : i32
    return %arg0, %c0_i32 : i32, i32
  }
  func.func @transform_6(%arg0: i32, %arg1: i32) -> (i32, i32) {
    %c0_i32 = arith.constant 0 : i32
    %c0_i32_0 = arith.constant 0 : i32
    return %arg0, %c0_i32 : i32, i32
  }
}

module attributes {stable_mosaic.version = 11 : i64} {
  func.func @_gcn_hidden_kernel(%arg0: i32, %arg1: i32, %arg2: memref<128x128xi8, #tpu.memory_space<vmem>>, %arg3: memref<256x128xbf16, #tpu.memory_space<vmem>>, %arg4: memref<128x1xf32, #tpu.memory_space<vmem>>, %arg5: memref<128x128xbf16, #tpu.memory_space<vmem>>, %arg6: memref<1x128xf32, #tpu.memory_space<vmem>>, %arg7: memref<128x128xbf16, #tpu.memory_space<vmem>>, %arg8: memref<128x128xf32, #tpu.memory_space<vmem>>) attributes {dimension_semantics = [#tpu.dimension_semantics<parallel>, #tpu.dimension_semantics<arbitrary>], iteration_bounds = array<i64: 2, 2>, scalar_prefetch = 0 : i64, scratch_operands = 1 : i64, tpu.core_type = #tpu.core_type<tc>, window_params = [{transform_indices = @transform_0, window_bounds = array<i64: 128, 128>}, {pipeline_mode = #tpu.pipeline_mode<synchronous>, transform_indices = @transform_1, window_bounds = array<i64: 256, 128>}, {transform_indices = @transform_2, window_bounds = array<i64: 128, 1>}, {pipeline_mode = #tpu.pipeline_mode<synchronous>, transform_indices = @transform_3, window_bounds = array<i64: 128, 128>}, {pipeline_mode = #tpu.pipeline_mode<synchronous>, transform_indices = @transform_4, window_bounds = array<i64: 1, 128>}, {transform_indices = @transform_5, window_bounds = array<i64: 128, 128>}]} {
    %c128_i32 = arith.constant 128 : i32
    %0 = arith.muli %arg1, %c128_i32 : i32
    %1 = tpu.assume_multiple %0, 128 : i32
    %2 = arith.index_cast %1 : i32 to index
    %c0 = arith.constant 0 : index
    %3 = vector.load %arg3[%2, %c0] : memref<256x128xbf16, #tpu.memory_space<vmem>>, vector<128x128xbf16>
    %c0_0 = arith.constant 0 : index
    %c0_1 = arith.constant 0 : index
    %4 = vector.load %arg2[%c0_0, %c0_1] : memref<128x128xi8, #tpu.memory_space<vmem>>, vector<128x128xi8>
    %5 = arith.sitofp %4 : vector<128x128xi8> to vector<128x128xbf16>
    %cst = arith.constant dense<0.000000e+00> : vector<128x128xf32>
    %6 = tpu.matmul %5, %3, %cst {dimension_numbers = #tpu.dot_dimension_numbers<[1], [0], [0], [1], [0, 0, 1, 1], [], []>} : vector<128x128xbf16>, vector<128x128xbf16>, vector<128x128xf32> -> vector<128x128xf32>
    %c0_i32 = arith.constant 0 : i32
    %7 = arith.cmpi eq, %arg1, %c0_i32 : i32
    %8 = arith.extui %7 : i1 to i32
    %c0_i32_2 = arith.constant 0 : i32
    %9 = arith.cmpi ne, %8, %c0_i32_2 : i32
    scf.if %9 {
      %c0_6 = arith.constant 0 : index
      %c0_7 = arith.constant 0 : index
      %16 = vector.load %arg8[%c0_6, %c0_7] : memref<128x128xf32, #tpu.memory_space<vmem>>, vector<128x128xf32>
      tpu.vector_store %arg8[%c0_6, %c0_7], %6 {strides = array<i32>} : memref<128x128xf32, #tpu.memory_space<vmem>>, vector<128x128xf32>,
    } else {
    }
    %c0_i32_3 = arith.constant 0 : i32
    %10 = arith.cmpi sgt, %arg1, %c0_i32_3 : i32
    %11 = arith.extui %10 : i1 to i32
    %c0_i32_4 = arith.constant 0 : i32
    %12 = arith.cmpi ne, %11, %c0_i32_4 : i32
    scf.if %12 {
      %c0_6 = arith.constant 0 : index
      %c0_7 = arith.constant 0 : index
      %16 = vector.load %arg8[%c0_6, %c0_7] : memref<128x128xf32, #tpu.memory_space<vmem>>, vector<128x128xf32>
      %17 = arith.addf %16, %6 : vector<128x128xf32>
      %c0_8 = arith.constant 0 : index
      %c0_9 = arith.constant 0 : index
      %18 = vector.load %arg8[%c0_8, %c0_9] : memref<128x128xf32, #tpu.memory_space<vmem>>, vector<128x128xf32>
      tpu.vector_store %arg8[%c0_8, %c0_9], %17 {strides = array<i32>} : memref<128x128xf32, #tpu.memory_space<vmem>>, vector<128x128xf32>,
    } else {
    }
    %c1_i32 = arith.constant 1 : i32
    %13 = arith.cmpi eq, %arg1, %c1_i32 : i32
    %14 = arith.extui %13 : i1 to i32
    %c0_i32_5 = arith.constant 0 : i32
    %15 = arith.cmpi ne, %14, %c0_i32_5 : i32
    scf.if %15 {
      %c0_6 = arith.constant 0 : index
      %c0_7 = arith.constant 0 : index
      %16 = vector.load %arg8[%c0_6, %c0_7] : memref<128x128xf32, #tpu.memory_space<vmem>>, vector<128x128xf32>
      %c0_8 = arith.constant 0 : index
      %c0_9 = arith.constant 0 : index
      %17 = vector.load %arg4[%c0_8, %c0_9] : memref<128x1xf32, #tpu.memory_space<vmem>>, vector<128x1xf32>
      %18 = vector.broadcast %17 : vector<128x1xf32> to vector<128x128xf32>
      %19 = arith.mulf %16, %18 : vector<128x128xf32>
      %20 = arith.truncf %19 : vector<128x128xf32> to vector<128x128xbf16>
      %c0_10 = arith.constant 0 : index
      %c0_11 = arith.constant 0 : index
      %21 = vector.load %arg5[%c0_10, %c0_11] : memref<128x128xbf16, #tpu.memory_space<vmem>>, vector<128x128xbf16>
      %cst_12 = arith.constant dense<0.000000e+00> : vector<128x128xf32>
      %22 = tpu.matmul %20, %21, %cst_12 {dimension_numbers = #tpu.dot_dimension_numbers<[1], [0], [0], [1], [0, 0, 1, 1], [], []>} : vector<128x128xbf16>, vector<128x128xbf16>, vector<128x128xf32> -> vector<128x128xf32>
      %c0_13 = arith.constant 0 : index
      %c0_14 = arith.constant 0 : index
      %23 = vector.load %arg6[%c0_13, %c0_14] : memref<1x128xf32, #tpu.memory_space<vmem>>, vector<1x128xf32>
      %24 = vector.broadcast %23 : vector<1x128xf32> to vector<128x128xf32>
      %25 = arith.addf %22, %24 : vector<128x128xf32>
      %cst_15 = arith.constant 0.000000e+00 : f32
      %26 = vector.broadcast %cst_15 : f32 to vector<128x128xf32>
      %27 = arith.maximumf %25, %26 : vector<128x128xf32>
      %28 = arith.truncf %27 : vector<128x128xf32> to vector<128x128xbf16>
      %c0_16 = arith.constant 0 : index
      %c0_17 = arith.constant 0 : index
      %29 = vector.load %arg7[%c0_16, %c0_17] : memref<128x128xbf16, #tpu.memory_space<vmem>>, vector<128x128xbf16>
      tpu.vector_store %arg7[%c0_16, %c0_17], %28 {strides = array<i32>} : memref<128x128xbf16, #tpu.memory_space<vmem>>, vector<128x128xbf16>,
    } else {
    }
    return
  }
  func.func @transform_0(%arg0: i32, %arg1: i32) -> (i32, i32) {
    %c0_i32 = arith.constant 0 : i32
    return %arg0, %arg1 : i32, i32
  }
  func.func @transform_1(%arg0: i32, %arg1: i32) -> (i32, i32) {
    %c0_i32 = arith.constant 0 : i32
    %c0_i32_0 = arith.constant 0 : i32
    %c0_i32_1 = arith.constant 0 : i32
    return %c0_i32, %c0_i32_0 : i32, i32
  }
  func.func @transform_2(%arg0: i32, %arg1: i32) -> (i32, i32) {
    %c0_i32 = arith.constant 0 : i32
    %c0_i32_0 = arith.constant 0 : i32
    return %arg0, %c0_i32 : i32, i32
  }
  func.func @transform_3(%arg0: i32, %arg1: i32) -> (i32, i32) {
    %c0_i32 = arith.constant 0 : i32
    %c0_i32_0 = arith.constant 0 : i32
    %c0_i32_1 = arith.constant 0 : i32
    return %c0_i32, %c0_i32_0 : i32, i32
  }
  func.func @transform_4(%arg0: i32, %arg1: i32) -> (i32, i32) {
    %c0_i32 = arith.constant 0 : i32
    %c0_i32_0 = arith.constant 0 : i32
    %c0_i32_1 = arith.constant 0 : i32
    return %c0_i32, %c0_i32_0 : i32, i32
  }
  func.func @transform_5(%arg0: i32, %arg1: i32) -> (i32, i32) {
    %c0_i32 = arith.constant 0 : i32
    %c0_i32_0 = arith.constant 0 : i32
    return %arg0, %c0_i32 : i32, i32
  }
}

</mosaic_0001>

<llo_original>
// kernel: gcn_nodeflow_forward.2
$region0: #{gcn_nodeflow_forward.2}
  #allocation0 [shape = 'u32[]', space=smem, size = 0x4, offset = 0x4, fixed_abs, tag = 'smem constant byte address 0x4 - core index']
  #allocation1 [shape = 'u32[144,128]{1,0:T(1,128)}', space=vmem, size = 0x12000, scoped, tag = 'internal scratch']
  #allocation2 [shape = 'f32[128,128]{1,0:T(8,128)}', space=vmem, size = 0x10000, scoped, tag = 'scratch operand']
  %s0 = inlined_call_operand.vmem [shape: s8[256,256], index: 0, kind: input, shape index: {}]
  %s1 = inlined_call_operand.vmem [shape: bf16[256,128], index: 1, kind: input, shape index: {}]
  %s2 = inlined_call_operand.vmem [shape: f32[256,1], index: 2, kind: input, shape index: {}]
  %s3 = inlined_call_operand.vmem [shape: bf16[128,128], index: 3, kind: input, shape index: {}]
  %s4 = inlined_call_operand.vmem [shape: f32[1,128], index: 4, kind: input, shape index: {}]
  %s5 = inlined_call_operand.vmem [shape: bf16[256,128], index: 5, kind: output, shape index: {}]
  %s6 = sld [smem:[#allocation0]]
  $region103: #{gcn_nodeflow_forward.2} parent=0
    _
  %s8 = ssub.s32 1, %s6
  %s9 = scalar_select 0, %s8, %s6
  $region1: #{gcn_nodeflow_forward.2} parent=0
    #allocation3 [shape = 'u8[32768]{0}', space=vmem, size = 0x8000, scoped, tag = 'input window, operand 0']
    loop: start=0, step=1, limit=6
    $region2: #{gcn_nodeflow_forward.2} parent=1 // loop_pre_header
      _
    $region3: #{gcn_nodeflow_forward.2} parent=1 // loop_header
      %s11 = sphi 0, %s15
      %p12 = scmp.ge.s32.totalorder %s11, 6
      %s18 = sphi 0, %s30
      %s19 = sphi 0, %s26
      %s20 = sphi 0, %s18
      %s21 = sphi 0, %s19
      %s22 = sphi 0, %s20
      %s23 = sphi 0, %s21
      %s35 = sphi 0, %s37
      %s38 = sphi 0, %s35
      %s39 = sphi 0, %s38
      %s55 = sphi 0, %s39
      %s59 = sphi 0, %s59
      %s61 = sphi 0, %s59
      %s62 = sphi 0, %s61
      %s76 = sphi 0, %s62
      %s82 = sphi 0, %s84
      %s85 = sphi 0, %s82
      %s86 = sphi 0, %s85
      %s102 = sphi 0, %s86
      %s106 = sphi 0, %s106
      %s108 = sphi 0, %s106
      %s109 = sphi 0, %s108
      %s123 = sphi 0, %s109
      %s127 = sphi 0, %s127
      %s129 = sphi 0, %s127
      %s130 = sphi 0, %s129
      %s144 = sphi 0, %s130
      %s150 = sphi 0, %s152
      %s153 = sphi 0, %s150
      %s154 = sphi 0, %s153
      %s170 = sphi 0, %s154
    $region4: #{gcn_nodeflow_forward.2} parent=1 // loop_header_branch
      %14 = sbr.rel (%p12) target = $region8
    $region5: #{gcn_nodeflow_forward.2} parent=1 // loop_body
      %s16 = ssub.s32 %s11, 1
      %s17 = ssub.s32 %s11, 2
      %s24 = sadd.s32 1, %s19
      %p25 = scmp.ge.s32.totalorder %s24, 2
      %s26 = scalar_select %p25, 0, %s24
      %s27 = sadd.s32 1, %s18
      %s28 = scalar_select %p25, %s27, %s18
      %p29 = scmp.ge.s32.totalorder %s28, 2
      %s30 = scalar_select %p29, 0, %s28
      %s31 = ssub.s32 %s18, %s30
      %s32 = ssub.s32 %s19, %s26
      %s33 = sor.u32 %s31, %s32
      %p34 = scmp.eq.s32.totalorder %s33, 0
      %s36 = sadd.s32 %s35, 1
      %s37 = scalar_select %p34, %s35, %s36
      %p40 = pneg %p34
      %p41 = scmp.eq.s32.totalorder %s11, 3
      %p42 = por %p40, %p41
      %p43 = scmp.ne.s32.totalorder %s35, %s38
      %p44 = scmp.eq.s32.totalorder %s11, 0
      %p45 = por %p43, %p44
      %p46 = scmp.ne.s32.totalorder %s35, %s38
      %p47 = scmp.eq.s32.totalorder %s16, 3
      %p48 = por %p46, %p47
      %p49 = scmp.ne.s32.totalorder %s38, %s39
      %p50 = scmp.eq.s32.totalorder %s16, 0
      %p51 = por %p49, %p50
      %p52 = scmp.ne.s32.totalorder %s38, %s39
      %p53 = scmp.eq.s32.totalorder %s17, 3
      %p54 = por %p52, %p53
      %p56 = scmp.ne.s32.totalorder %s39, %s55
      %p57 = scmp.eq.s32.totalorder %s17, 0
      %p58 = por %p56, %p57
      %s60 = sadd.s32 %s59, 1
      %p63 = scmp.eq.s32.totalorder %s11, 3
      %p64 = scmp.ne.s32.totalorder %s59, %s61
      %p65 = scmp.eq.s32.totalorder %s11, 0
      %p66 = por %p64, %p65
      %p67 = scmp.ne.s32.totalorder %s59, %s61
      %p68 = scmp.eq.s32.totalorder %s16, 3
      %p69 = por %p67, %p68
      %p70 = scmp.ne.s32.totalorder %s61, %s62
      %p71 = scmp.eq.s32.totalorder %s16, 0
      %p72 = por %p70, %p71
      %p73 = scmp.ne.s32.totalorder %s61, %s62
      %p74 = scmp.eq.s32.totalorder %s17, 3
      %p75 = por %p73, %p74
      %p77 = scmp.ne.s32.totalorder %s62, %s76
      %p78 = scmp.eq.s32.totalorder %s17, 0
      %p79 = por %p77, %p78
      %s80 = ssub.s32 %s18, %s30
      %p81 = scmp.eq.s32.totalorder %s80, 0
      %s83 = sadd.s32 %s82, 1
      %s84 = scalar_select %p81, %s82, %s83
      %p87 = pneg %p81
      %p88 = scmp.eq.s32.totalorder %s11, 3
      %p89 = por %p87, %p88
      %p90 = scmp.ne.s32.totalorder %s82, %s85
      %p91 = scmp.eq.s32.totalorder %s11, 0
      %p92 = por %p90, %p91
      %p93 = scmp.ne.s32.totalorder %s82, %s85
      %p94 = scmp.eq.s32.totalorder %s16, 3
      %p95 = por %p93, %p94
      %p96 = scmp.ne.s32.totalorder %s85, %s86
      %p97 = scmp.eq.s32.totalorder %s16, 0
      %p98 = por %p96, %p97
      %p99 = scmp.ne.s32.totalorder %s85, %s86
      %p100 = scmp.eq.s32.totalorder %s17, 3
      %p101 = por %p99, %p100
      %p103 = scmp.ne.s32.totalorder %s86, %s102
      %p104 = scmp.eq.s32.totalorder %s17, 0
      %p105 = por %p103, %p104
      %s107 = sadd.s32 %s106, 1
      %p110 = scmp.eq.s32.totalorder %s11, 3
      %p111 = scmp.ne.s32.totalorder %s106, %s108
      %p112 = scmp.eq.s32.totalorder %s11, 0
      %p113 = por %p111, %p112
      %p114 = scmp.ne.s32.totalorder %s106, %s108
      %p115 = scmp.eq.s32.totalorder %s16, 3
      %p116 = por %p114, %p115
      %p117 = scmp.ne.s32.totalorder %s108, %s109
      %p118 = scmp.eq.s32.totalorder %s16, 0
      %p119 = por %p117, %p118
      %p120 = scmp.ne.s32.totalorder %s108, %s109
      %p121 = scmp.eq.s32.totalorder %s17, 3
      %p122 = por %p120, %p121
      %p124 = scmp.ne.s32.totalorder %s109, %s123
      %p125 = scmp.eq.s32.totalorder %s17, 0
      %p126 = por %p124, %p125
      %s128 = sadd.s32 %s127, 1
      %p131 = scmp.eq.s32.totalorder %s11, 3
      %p132 = scmp.ne.s32.totalorder %s127, %s129
      %p133 = scmp.eq.s32.totalorder %s11, 0
      %p134 = por %p132, %p133
      %p135 = scmp.ne.s32.totalorder %s127, %s129
      %p136 = scmp.eq.s32.totalorder %s16, 3
      %p137 = por %p135, %p136
      %p138 = scmp.ne.s32.totalorder %s129, %s130
      %p139 = scmp.eq.s32.totalorder %s16, 0
      %p140 = por %p138, %p139
      %p141 = scmp.ne.s32.totalorder %s129, %s130
      %p142 = scmp.eq.s32.totalorder %s17, 3
      %p143 = por %p141, %p142
      %p145 = scmp.ne.s32.totalorder %s130, %s144
      %p146 = scmp.eq.s32.totalorder %s17, 0
      %p147 = por %p145, %p146
      %s148 = ssub.s32 %s18, %s30
      %p149 = scmp.eq.s32.totalorder %s148, 0
      %s151 = sadd.s32 %s150, 1
      %s152 = scalar_select %p149, %s150, %s151
      %p155 = pneg %p149
      %p156 = scmp.eq.s32.totalorder %s11, 3
      %p157 = por %p155, %p156
      %p158 = scmp.ne.s32.totalorder %s150, %s153
      %p159 = scmp.eq.s32.totalorder %s11, 0
      %p160 = por %p158, %p159
      %p161 = scmp.ne.s32.totalorder %s150, %s153
      %p162 = scmp.eq.s32.totalorder %s16, 3
      %p163 = por %p161, %p162
      %p164 = scmp.ne.s32.totalorder %s153, %s154
      %p165 = scmp.eq.s32.totalorder %s16, 0
      %p166 = por %p164, %p165
      %p167 = scmp.ne.s32.totalorder %s153, %s154
      %p168 = scmp.eq.s32.totalorder %s17, 3
      %p169 = por %p167, %p168
      %p171 = scmp.ne.s32.totalorder %s154, %s170
      %p172 = scmp.eq.s32.totalorder %s17, 0
      %p173 = por %p171, %p172
      %p174 = scmp.le.s32.totalorder 1, %s11
      %p175 = scmp.lt.s32.totalorder %s11, 5
      %p176 = pnand %p174, %p175
      %p177 = pneg %p176
      // Predicated region
      $region9: #{gcn_nodeflow_forward.2} parent=5 // pred_check
        _
      $region10: #{gcn_nodeflow_forward.2} parent=5 // pred_check_branch
        %179 = sbr.rel (%p176) target = $region12
      $region11: #{gcn_nodeflow_forward.2} parent=5 // pred_region
        %s180 = ssub.s32 %s11, 1
        // Predicated region
        $region13: #{gcn_nodeflow_forward.2} parent=11 // pred_check
          %p181 = pneg %p72
        $region14: #{gcn_nodeflow_forward.2} parent=11 // pred_check_branch
          %183 = sbr.rel (%p181) target = $region16
        $region15: #{gcn_nodeflow_forward.2} parent=11 // pred_region
          _
        $region16: #{gcn_nodeflow_forward.2} parent=11 // pred_fallthru
          _
        // Predicated region
        $region17: #{gcn_nodeflow_forward.2} parent=11 // pred_check
          %p184 = pneg %p119
        $region18: #{gcn_nodeflow_forward.2} parent=11 // pred_check_branch
          %186 = sbr.rel (%p184) target = $region20
        $region19: #{gcn_nodeflow_forward.2} parent=11 // pred_region
          _
        $region20: #{gcn_nodeflow_forward.2} parent=11 // pred_fallthru
          _
        // Predicated region
        $region21: #{gcn_nodeflow_forward.2} parent=11 // pred_check
          %p187 = pneg %p140
        $region22: #{gcn_nodeflow_forward.2} parent=11 // pred_check_branch
          %189 = sbr.rel (%p187) target = $region24
        $region23: #{gcn_nodeflow_forward.2} parent=11 // pred_region
          _
        $region24: #{gcn_nodeflow_forward.2} parent=11 // pred_fallthru
          _
      $region12: #{gcn_nodeflow_forward.2} parent=5 // pred_fallthru
        _
      %p190 = scmp.lt.s32.totalorder %s11, 4
      // Predicated region
      $region25: #{gcn_nodeflow_forward.2} parent=5 // pred_check
        %p191 = pneg %p190
      $region26: #{gcn_nodeflow_forward.2} parent=5 // pred_check_branch
        %193 = sbr.rel (%p191) target = $region28
      $region27: #{gcn_nodeflow_forward.2} parent=5 // pred_region
        // Predicated region
        $region29: #{gcn_nodeflow_forward.2} parent=27 // pred_check
          %p194 = pneg %p45
        $region30: #{gcn_nodeflow_forward.2} parent=27 // pred_check_branch
          %196 = sbr.rel (%p194) target = $region32
        $region31: #{gcn_nodeflow_forward.2} parent=27 // pred_region
          %s197 = sand.u32 %s35, 1
          %s198 = sand.u32 %s35, 1
          %s199 = smul.addr %s198, 32
          %s200 = scalar_lea.vmem [#allocation3], %s199
          %s201 = smul.u32 4, %s18
          %s202 = smul.addr %s201, 2
          %s203 = sadd.s32 %s19, %s202
          %s204 = smul.addr %s203, 8
          %s205 = scalar_lea.vmem %s0, %s204
          // Predicated region
          $region33: #{gcn_nodeflow_forward.2} parent=31 // pred_check
            _
          $region34: #{gcn_nodeflow_forward.2} parent=31 // pred_check_branch
            %207 = sbr.rel (0) target = $region36
          $region35: #{gcn_nodeflow_forward.2} parent=31 // pred_region
            // Predicated region
            $region37: #{gcn_nodeflow_forward.2} parent=35 // pred_check
              _
            $region38: #{gcn_nodeflow_forward.2} parent=35 // pred_check_branch
              %209 = sbr.rel (0) target = $region40
            $region39: #{gcn_nodeflow_forward.2} parent=35 // pred_region
              // Predicated region
              $region52: #{gcn_nodeflow_forward.2} parent=39 // pred_check
                _
              $region53: #{gcn_nodeflow_forward.2} parent=39 // pred_check_branch
                %230 = sbr.rel (0) target = $region55
              $region54: #{gcn_nodeflow_forward.2} parent=39 // pred_region
                loop: start=0, step=1, limit=1
                $region56: #{gcn_nodeflow_forward.2} parent=54 // loop_pre_header
                  _
                $region57: #{gcn_nodeflow_forward.2} parent=54 // loop_header
                  %s232 = sphi 0, %s236
                  %p233 = scmp.ge.s32.totalorder %s232, 1
                  %s237 = sphi %s205, %s205
                  %s238 = sphi %s200, %s200
                $region58: #{gcn_nodeflow_forward.2} parent=54 // loop_header_branch
                  %235 = sbr.rel (%p233) target = $region62
                $region59: #{gcn_nodeflow_forward.2} parent=54 // loop_body
                  %v239 = vld [vmem:[%s237] sm:$0xff]
                  %240 = vst [vmem:[%s238] sm:$0xff] %v239
                  %v241 = vld [vmem:[%s237 + $0x10] sm:$0xff]
                  %242 = vst [vmem:[%s238 + $0x8] sm:$0xff] %v241
                  %v243 = vld [vmem:[%s237 + $0x20] sm:$0xff]
                  %244 = vst [vmem:[%s238 + $0x10] sm:$0xff] %v243
                  %v245 = vld [vmem:[%s237 + $0x30] sm:$0xff]
                  %246 = vst [vmem:[%s238 + $0x18] sm:$0xff] %v245
                $region60: #{gcn_nodeflow_forward.2} parent=54 // loop_footer
                  %s236 = sadd.s32 1, %s232
                $region61: #{gcn_nodeflow_forward.2} parent=54 // loop_footer_branch
                  %231 = sbr.rel target = $region57
                $region62: #{gcn_nodeflow_forward.2} parent=54 // loop_exit
                  _
              $region55: #{gcn_nodeflow_forward.2} parent=39 // pred_fallthru
                _
              // Predicated region
              $region63: #{gcn_nodeflow_forward.2} parent=39 // pred_check
                _
              $region64: #{gcn_nodeflow_forward.2} parent=39 // pred_check_branch
                %248 = sbr.rel target = $region66
              $region65: #{gcn_nodeflow_forward.2} parent=39 // pred_region
                _
              $region66: #{gcn_nodeflow_forward.2} parent=39 // pred_fallthru
                _
            $region40: #{gcn_nodeflow_forward.2} parent=35 // pred_fallthru
              _
            // Predicated region
            $region41: #{gcn_nodeflow_forward.2} parent=35 // pred_check
              _
            $region42: #{gcn_nodeflow_forward.2} parent=35 // pred_check_branch
              %211 = sbr.rel target = $region44
            $region43: #{gcn_nodeflow_forward.2} parent=35 // pred_region
              loop: start=0, step=1, limit=1
              $region45: #{gcn_nodeflow_forward.2} parent=43 // loop_pre_header
                _
              $region46: #{gcn_nodeflow_forward.2} parent=43 // loop_header
                %s214 = sphi 0, %s218
                %p215 = scmp.ge.s32.totalorder %s214, 1
                %s219 = sphi %s205, %s205
                %s220 = sphi %s200, %s200
              $region47: #{gcn_nodeflow_forward.2} parent=43 // loop_header_branch
                %217 = sbr.rel (%p215) target = $region51
              $region48: #{gcn_nodeflow_forward.2} parent=43 // loop_body
                %v221 = vld [vmem:[%s219] sm:$0xff]
                %222 = vst [vmem:[%s220] sm:$0xff] %v221
                %v223 = vld [vmem:[%s219 + $0x10] sm:$0xff]
                %224 = vst [vmem:[%s220 + $0x8] sm:$0xff] %v223
                %v225 = vld [vmem:[%s219 + $0x20] sm:$0xff]
                %226 = vst [vmem:[%s220 + $0x10] sm:$0xff] %v225
                %v227 = vld [vmem:[%s219 + $0x30] sm:$0xff]
                %228 = vst [vmem:[%s220 + $0x18] sm:$0xff] %v227
              $region49: #{gcn_nodeflow_forward.2} parent=43 // loop_footer
                %s218 = sadd.s32 1, %s214
              $region50: #{gcn_nodeflow_forward.2} parent=43 // loop_footer_branch
                %213 = sbr.rel target = $region46
              $region51: #{gcn_nodeflow_forward.2} parent=43 // loop_exit
                _
            $region44: #{gcn_nodeflow_forward.2} parent=35 // pred_fallthru
              _
          $region36: #{gcn_nodeflow_forward.2} parent=31 // pred_fallthru
            _
          %249 = vnop
        $region32: #{gcn_nodeflow_forward.2} parent=27 // pred_fallthru
          _
        // Predicated region
        $region67: #{gcn_nodeflow_forward.2} parent=27 // pred_check
          %p250 = pneg %p92
        $region68: #{gcn_nodeflow_forward.2} parent=27 // pred_check_branch
          %252 = sbr.rel (%p250) target = $region70
        $region69: #{gcn_nodeflow_forward.2} parent=27 // pred_region
          %s253 = smul.u32 16, %s18
          %p254 = scmp.lt.s32.totalorder %s253, 31
          %s255 = scalar_select %p254, %s253, 31
          %s256 = smul.addr %s255, 8
          %s257 = scalar_lea.vmem %s2, %s256
          %s258 = smul.u32 16, %s18
        $region70: #{gcn_nodeflow_forward.2} parent=27 // pred_fallthru
          _
      $region28: #{gcn_nodeflow_forward.2} parent=5 // pred_fallthru
        _
      %p259 = scmp.le.s32.totalorder 1, %s11
      %p260 = scmp.lt.s32.totalorder %s11, 5
      %p261 = pnand %p259, %p260
      %p262 = pneg %p261
      // Predicated region
      $region71: #{gcn_nodeflow_forward.2} parent=5 // pred_check
        _
      $region72: #{gcn_nodeflow_forward.2} parent=5 // pred_check_branch
        %264 = sbr.rel (%p261) target = $region74
      $region73: #{gcn_nodeflow_forward.2} parent=5 // pred_region
        %s265 = ssub.s32 %s11, 1
        %s266 = sand.u32 %s38, 1
        %s267 = sand.u32 %s38, 1
        %s268 = smul.addr %s267, 32
        %s269 = scalar_lea.vmem [#allocation3], %s268
        // Predicated region
        $region75: #{gcn_nodeflow_forward.2} parent=73 // pred_check
          %p270 = pneg %p51
        $region76: #{gcn_nodeflow_forward.2} parent=73 // pred_check_branch
          %272 = sbr.rel (%p270) target = $region78
        $region77: #{gcn_nodeflow_forward.2} parent=73 // pred_region
          _
        $region78: #{gcn_nodeflow_forward.2} parent=73 // pred_fallthru
          _
        %s273 = sand.u32 %s38, 1
        %s274 = sand.u32 %s38, 1
        %s275 = smul.addr %s274, 32
        %s276 = scalar_lea.vmem [#allocation3], %s275
        %p277 = pneg %p51
        %p278 = pneg %p48
        %p279 = pneg %p72
        %p280 = pneg %p69
        %s281 = smul.u32 16, %s20
        %p282 = scmp.lt.s32.totalorder %s281, 31
        %s283 = scalar_select %p282, %s281, 31
        %s284 = smul.addr %s283, 8
        %s285 = scalar_lea.vmem %s2, %s284
        %p286 = pneg %p98
        %p287 = pneg %p95
        %p288 = pneg %p119
        %p289 = pneg %p116
        %p290 = pneg %p140
        %p291 = pneg %p137
        %p292 = pneg %p166
        %p293 = pneg %p163
        %s294 = smul.u32 16, %s20
        %p295 = scmp.lt.s32.totalorder %s294, 31
        %s296 = scalar_select %p295, %s294, 31
        %s297 = smul.addr %s296, 4
        %s298 = scalar_lea.vmem %s5, %s297
        %s299 = smul.u32 4, %s20
        %s300 = smul.u32 16, %s20
        %p301 = scmp.lt.s32.totalorder %s300, 31
        %s302 = scalar_select %p301, %s300, 31
        %s303 = smul.addr %s302, 8
        %s304 = scalar_lea.vmem %s2, %s303
        %s305 = smul.u32 16, %s20
        %s306 = smul.u32 16, %s20
        %p307 = scmp.lt.s32.totalorder %s306, 31
        %s308 = scalar_select %p307, %s306, 31
        %s309 = smul.addr %s308, 4
        %s310 = scalar_lea.vmem %s5, %s309
        %s311 = smul.u32 16, %s20
        %s313 = smul.u32 %s21, 128
        %s314 = sshra.s32 %s313, 3
        %s315 = sand.u32 %s313, 7
        %s316 = smul.addr %s314, 4
        %s317 = scalar_lea.vmem %s1, %s316
        %v318 = vld [vmem:[%s317] sm:$0xf]
        %v319 = vld [vmem:[%s317 + $0x4] sm:$0xf]
        %v320 = vld [vmem:[%s317 + $0x8] sm:$0xf]
        %v321 = vld [vmem:[%s317 + $0xc] sm:$0xf]
        %v322 = vld [vmem:[%s317 + $0x10] sm:$0xf]
        %v323 = vld [vmem:[%s317 + $0x14] sm:$0xf]
        %v324 = vld [vmem:[%s317 + $0x18] sm:$0xf]
        %v325 = vld [vmem:[%s317 + $0x1c] sm:$0xf]
        %v326 = vld [vmem:[%s317 + $0x20] sm:$0xf]
        %v327 = vld [vmem:[%s317 + $0x24] sm:$0xf]
        %v328 = vld [vmem:[%s317 + $0x28] sm:$0xf]
        %v329 = vld [vmem:[%s317 + $0x2c] sm:$0xf]
        %v330 = vld [vmem:[%s317 + $0x30] sm:$0xf]
        %v331 = vld [vmem:[%s317 + $0x34] sm:$0xf]
        %v332 = vld [vmem:[%s317 + $0x38] sm:$0xf]
        %v333 = vld [vmem:[%s317 + $0x3c] sm:$0xf]
        %v334 = vld [vmem:[%s269] sm:$0xff]
        %v335 = vld [vmem:[%s269 + $0x8] sm:$0xff]
        %v336 = vld [vmem:[%s269 + $0x10] sm:$0xff]
        %v337 = vld [vmem:[%s269 + $0x18] sm:$0xff]
        %v338 = vunpack.c.l.s8.bf16 %v334
        %v339 = vunpack.c.h.s8.bf16 %v334
        %v340 = vunpack.c.l.s8.bf16 %v335
        %v341 = vunpack.c.h.s8.bf16 %v335
        %v342 = vunpack.c.l.s8.bf16 %v336
        %v343 = vunpack.c.h.s8.bf16 %v336
        %v344 = vunpack.c.l.s8.bf16 %v337
        %v345 = vunpack.c.h.s8.bf16 %v337
        %v362 = vunpack.c.l.b16 %v318
        %v363 = vunpack.c.l.b16 %v319
        %v364 = vunpack.c.l.b16 %v320
        %v365 = vunpack.c.l.b16 %v321
        %v366 = vunpack.c.l.b16 %v322
        %v367 = vunpack.c.l.b16 %v323
        %v368 = vunpack.c.l.b16 %v324
        %v369 = vunpack.c.l.b16 %v325
        %v370 = vunpack.c.l.b16 %v326
        %v371 = vunpack.c.l.b16 %v327
        %v372 = vunpack.c.l.b16 %v328
        %v373 = vunpack.c.l.b16 %v329
        %v374 = vunpack.c.l.b16 %v330
        %v375 = vunpack.c.l.b16 %v331
        %v376 = vunpack.c.l.b16 %v332
        %v377 = vunpack.c.l.b16 %v333
        %v378 = vpack.c.b16 %v363, %v362
        %v379 = vpack.c.b16 %v365, %v364
        %v380 = vpack.c.b16 %v367, %v366
        %v381 = vpack.c.b16 %v369, %v368
        %v382 = vpack.c.b16 %v371, %v370
        %v383 = vpack.c.b16 %v373, %v372
        %v384 = vpack.c.b16 %v375, %v374
        %v385 = vpack.c.b16 %v377, %v376
        %394 = vmatprep.subr.bf16.mxu0 0
        %395 = vmatpush1.bf16.msra.mxu0 %v378
        %396 = vmatprep.subr.bf16.mxu0 0
        %397 = vmatpush1.bf16.msra.mxu0 %v379
        %398 = vmatprep.subr.bf16.mxu0 0
        %399 = vmatpush1.bf16.msra.mxu0 %v380
        %400 = vmatprep.subr.bf16.mxu0 0
        %401 = vmatpush1.bf16.msra.mxu0 %v381
        %402 = vmatprep.subr.bf16.mxu0 0
        %403 = vmatpush1.bf16.msra.mxu0 %v382
        %404 = vmatprep.subr.bf16.mxu0 0
        %405 = vmatpush1.bf16.msra.mxu0 %v383
        %406 = vmatprep.subr.bf16.mxu0 0
        %407 = vmatpush1.bf16.msra.mxu0 %v384
        %408 = vmatprep.subr.bf16.mxu0 0
        %409 = vmatpush1.bf16.msra.mxu0 %v385
        %410 = vmatprep.subr.bf16.mxu0 0
        %411 = vmatpush1.bf16.msra.mxu0 0
        %412 = vmatprep.subr.bf16.mxu0 0
        %413 = vmatpush1.bf16.msra.mxu0 0
        %414 = vmatprep.subr.bf16.mxu0 0
        %415 = vmatpush1.bf16.msra.mxu0 0
        %416 = vmatprep.subr.bf16.mxu0 0
        %417 = vmatpush1.bf16.msra.mxu0 0
        %418 = vmatprep.subr.bf16.mxu0 0
        %419 = vmatpush1.bf16.msra.mxu0 0
        %420 = vmatprep.subr.bf16.mxu0 0
        %421 = vmatpush1.bf16.msra.mxu0 0
        %422 = vmatprep.subr.bf16.mxu0 0
        %423 = vmatpush1.bf16.msra.mxu0 0
        %424 = vmatprep.subr.bf16.mxu0 0
        %425 = vmatpush1.bf16.msra.mxu0 0
        %426 = vmatprep.mubr.bf16.mxu0 0
        %427 = vmatmul.mubr.bf16.gmra.mrb[0].mxu0 %v338
        %v428 = vpop.f32.mrb[0].mxu0
        %v429 = vadd.f32 0.0, %v428
        %v430 = vpop.f32.mrb[0].mxu0
        %v431 = vpop.f32.mrb[0].mxu0
        %v432 = vadd.f32 0.0, %v431
        %v433 = vpop.f32.mrb[0].mxu0
        %434 = vmatprep.mubr.bf16.mxu0 0
        %435 = vmatmul.mubr.bf16.gmra.mrb[0].mxu0 %v339
        %v436 = vpop.f32.mrb[0].mxu0
        %v437 = vadd.f32 0.0, %v436
        %v438 = vpop.f32.mrb[0].mxu0
        %v439 = vpop.f32.mrb[0].mxu0
        %v440 = vadd.f32 0.0, %v439
        %v441 = vpop.f32.mrb[0].mxu0
        %442 = vmatprep.mubr.bf16.mxu0 0
        %443 = vmatmul.mubr.bf16.gmra.mrb[0].mxu0 %v340
        %v444 = vpop.f32.mrb[0].mxu0
        %v445 = vadd.f32 0.0, %v444
        %v446 = vpop.f32.mrb[0].mxu0
        %v447 = vpop.f32.mrb[0].mxu0
        %v448 = vadd.f32 0.0, %v447
        %v449 = vpop.f32.mrb[0].mxu0
        %450 = vmatprep.mubr.bf16.mxu0 0
        %451 = vmatmul.mubr.bf16.gmra.mrb[0].mxu0 %v341
        %v452 = vpop.f32.mrb[0].mxu0
        %v453 = vadd.f32 0.0, %v452
        %v454 = vpop.f32.mrb[0].mxu0
        %v455 = vpop.f32.mrb[0].mxu0
        %v456 = vadd.f32 0.0, %v455
        %v457 = vpop.f32.mrb[0].mxu0
        %458 = vmatprep.mubr.bf16.mxu0 0
        %459 = vmatmul.mubr.bf16.gmra.mrb[0].mxu0 %v342
        %v460 = vpop.f32.mrb[0].mxu0
        %v461 = vadd.f32 0.0, %v460
        %v462 = vpop.f32.mrb[0].mxu0
        %v463 = vpop.f32.mrb[0].mxu0
        %v464 = vadd.f32 0.0, %v463
        %v465 = vpop.f32.mrb[0].mxu0
        %466 = vmatprep.mubr.bf16.mxu0 0
        %467 = vmatmul.mubr.bf16.gmra.mrb[0].mxu0 %v343
        %v468 = vpop.f32.mrb[0].mxu0
        %v469 = vadd.f32 0.0, %v468
        %v470 = vpop.f32.mrb[0].mxu0
        %v471 = vpop.f32.mrb[0].mxu0
        %v472 = vadd.f32 0.0, %v471
        %v473 = vpop.f32.mrb[0].mxu0
        %474 = vmatprep.mubr.bf16.mxu0 0
        %475 = vmatmul.mubr.bf16.gmra.mrb[0].mxu0 %v344
        %v476 = vpop.f32.mrb[0].mxu0
        %v477 = vadd.f32 0.0, %v476
        %v478 = vpop.f32.mrb[0].mxu0
        %v479 = vpop.f32.mrb[0].mxu0
        %v480 = vadd.f32 0.0, %v479
        %v481 = vpop.f32.mrb[0].mxu0
        %482 = vmatprep.mubr.bf16.mxu0 0
        %483 = vmatmul.mubr.bf16.gmra.mrb[0].mxu0 %v345
        %v484 = vpop.f32.mrb[0].mxu0
        %v485 = vadd.f32 0.0, %v484
        %v486 = vpop.f32.mrb[0].mxu0
        %v487 = vpop.f32.mrb[0].mxu0
        %v488 = vadd.f32 0.0, %v487
        %v489 = vpop.f32.mrb[0].mxu0
        %490 = vdwg.mxu0
        %p491 = scmp.eq.s32.totalorder %s21, 0
        // Predicated region
        $region79: #{gcn_nodeflow_forward.2} parent=73 // pred_check
          %p492 = pneg %p491
        $region80: #{gcn_nodeflow_forward.2} parent=73 // pred_check_branch
          %494 = sbr.rel (%p492) target = $region82
        $region81: #{gcn_nodeflow_forward.2} parent=73 // pred_region
          %495 = vst [vmem:[#allocation2] sm:$0xff] %v429
          %496 = vst [vmem:[#allocation2 + $0x8] sm:$0xff] %v432
          %497 = vst [vmem:[#allocation2 + $0x10] sm:$0xff] %v437
          %498 = vst [vmem:[#allocation2 + $0x18] sm:$0xff] %v440
          %499 = vst [vmem:[#allocation2 + $0x20] sm:$0xff] %v445
          %500 = vst [vmem:[#allocation2 + $0x28] sm:$0xff] %v448
          %501 = vst [vmem:[#allocation2 + $0x30] sm:$0xff] %v453
          %502 = vst [vmem:[#allocation2 + $0x38] sm:$0xff] %v456
          %503 = vst [vmem:[#allocation2 + $0x40] sm:$0xff] %v461
          %504 = vst [vmem:[#allocation2 + $0x48] sm:$0xff] %v464
          %505 = vst [vmem:[#allocation2 + $0x50] sm:$0xff] %v469
          %506 = vst [vmem:[#allocation2 + $0x58] sm:$0xff] %v472
          %507 = vst [vmem:[#allocation2 + $0x60] sm:$0xff] %v477
          %508 = vst [vmem:[#allocation2 + $0x68] sm:$0xff] %v480
          %509 = vst [vmem:[#allocation2 + $0x70] sm:$0xff] %v485
          %510 = vst [vmem:[#allocation2 + $0x78] sm:$0xff] %v488
        $region82: #{gcn_nodeflow_forward.2} parent=73 // pred_fallthru
          _
        %p511 = scmp.gt.s32.totalorder %s21, 0
        // Predicated region
        $region83: #{gcn_nodeflow_forward.2} parent=73 // pred_check
          %p512 = pneg %p511
        $region84: #{gcn_nodeflow_forward.2} parent=73 // pred_check_branch
          %514 = sbr.rel (%p512) target = $region86
        $region85: #{gcn_nodeflow_forward.2} parent=73 // pred_region
          %v515 = vld [vmem:[#allocation2] sm:$0xff]
          %v516 = vld [vmem:[#allocation2 + $0x8] sm:$0xff]
          %v517 = vld [vmem:[#allocation2 + $0x10] sm:$0xff]
          %v518 = vld [vmem:[#allocation2 + $0x18] sm:$0xff]
          %v519 = vld [vmem:[#allocation2 + $0x20] sm:$0xff]
          %v520 = vld [vmem:[#allocation2 + $0x28] sm:$0xff]
          %v521 = vld [vmem:[#allocation2 + $0x30] sm:$0xff]
          %v522 = vld [vmem:[#allocation2 + $0x38] sm:$0xff]
          %v523 = vld [vmem:[#allocation2 + $0x40] sm:$0xff]
          %v524 = vld [vmem:[#allocation2 + $0x48] sm:$0xff]
          %v525 = vld [vmem:[#allocation2 + $0x50] sm:$0xff]
          %v526 = vld [vmem:[#allocation2 + $0x58] sm:$0xff]
          %v527 = vld [vmem:[#allocation2 + $0x60] sm:$0xff]
          %v528 = vld [vmem:[#allocation2 + $0x68] sm:$0xff]
          %v529 = vld [vmem:[#allocation2 + $0x70] sm:$0xff]
          %v530 = vld [vmem:[#allocation2 + $0x78] sm:$0xff]
          %v531 = vadd.f32 %v515, %v429
          %v532 = vadd.f32 %v516, %v432
          %v533 = vadd.f32 %v517, %v437
          %v534 = vadd.f32 %v518, %v440
          %v535 = vadd.f32 %v519, %v445
          %v536 = vadd.f32 %v520, %v448
          %v537 = vadd.f32 %v521, %v453
          %v538 = vadd.f32 %v522, %v456
          %v539 = vadd.f32 %v523, %v461
          %v540 = vadd.f32 %v524, %v464
          %v541 = vadd.f32 %v525, %v469
          %v542 = vadd.f32 %v526, %v472
          %v543 = vadd.f32 %v527, %v477
          %v544 = vadd.f32 %v528, %v480
          %v545 = vadd.f32 %v529, %v485
          %v546 = vadd.f32 %v530, %v488
          %547 = vst [vmem:[#allocation2] sm:$0xff] %v531
          %548 = vst [vmem:[#allocation2 + $0x8] sm:$0xff] %v532
          %549 = vst [vmem:[#allocation2 + $0x10] sm:$0xff] %v533
          %550 = vst [vmem:[#allocation2 + $0x18] sm:$0xff] %v534
          %551 = vst [vmem:[#allocation2 + $0x20] sm:$0xff] %v535
          %552 = vst [vmem:[#allocation2 + $0x28] sm:$0xff] %v536
          %553 = vst [vmem:[#allocation2 + $0x30] sm:$0xff] %v537
          %554 = vst [vmem:[#allocation2 + $0x38] sm:$0xff] %v538
          %555 = vst [vmem:[#allocation2 + $0x40] sm:$0xff] %v539
          %556 = vst [vmem:[#allocation2 + $0x48] sm:$0xff] %v540
          %557 = vst [vmem:[#allocation2 + $0x50] sm:$0xff] %v541
          %558 = vst [vmem:[#allocation2 + $0x58] sm:$0xff] %v542
          %559 = vst [vmem:[#allocation2 + $0x60] sm:$0xff] %v543
          %560 = vst [vmem:[#allocation2 + $0x68] sm:$0xff] %v544
          %561 = vst [vmem:[#allocation2 + $0x70] sm:$0xff] %v545
          %562 = vst [vmem:[#allocation2 + $0x78] sm:$0xff] %v546
        $region86: #{gcn_nodeflow_forward.2} parent=73 // pred_fallthru
          _
        %p563 = scmp.eq.s32.totalorder %s21, 1
        // Predicated region
        $region87: #{gcn_nodeflow_forward.2} parent=73 // pred_check
          %p564 = pneg %p563
        $region88: #{gcn_nodeflow_forward.2} parent=73 // pred_check_branch
          %566 = sbr.rel (%p564) target = $region90
        $region89: #{gcn_nodeflow_forward.2} parent=73 // pred_region
          %v567 = vld [vmem:[#allocation2] sm:$0xff]
          %v568 = vld [vmem:[#allocation2 + $0x8] sm:$0xff]
          %v569 = vld [vmem:[#allocation2 + $0x10] sm:$0xff]
          %v570 = vld [vmem:[#allocation2 + $0x18] sm:$0xff]
          %v571 = vld [vmem:[#allocation2 + $0x20] sm:$0xff]
          %v572 = vld [vmem:[#allocation2 + $0x28] sm:$0xff]
          %v573 = vld [vmem:[#allocation2 + $0x30] sm:$0xff]
          %v574 = vld [vmem:[#allocation2 + $0x38] sm:$0xff]
          %v575 = vld [vmem:[#allocation2 + $0x40] sm:$0xff]
          %v576 = vld [vmem:[#allocation2 + $0x48] sm:$0xff]
          %v577 = vld [vmem:[#allocation2 + $0x50] sm:$0xff]
          %v578 = vld [vmem:[#allocation2 + $0x58] sm:$0xff]
          %v579 = vld [vmem:[#allocation2 + $0x60] sm:$0xff]
          %v580 = vld [vmem:[#allocation2 + $0x68] sm:$0xff]
          %v581 = vld [vmem:[#allocation2 + $0x70] sm:$0xff]
          %v582 = vld [vmem:[#allocation2 + $0x78] sm:$0xff]
          %v583 = vld [vmem:[%s304] sm:$0xff]
          %v584 = vld [vmem:[%s304 + $0x8] sm:$0xff]
          %v585 = vld [vmem:[%s304 + $0x10] sm:$0xff]
          %v586 = vld [vmem:[%s304 + $0x18] sm:$0xff]
          %v587 = vld [vmem:[%s304 + $0x20] sm:$0xff]
          %v588 = vld [vmem:[%s304 + $0x28] sm:$0xff]
          %v589 = vld [vmem:[%s304 + $0x30] sm:$0xff]
          %v590 = vld [vmem:[%s304 + $0x38] sm:$0xff]
          %v591 = vld [vmem:[%s304 + $0x40] sm:$0xff]
          %v592 = vld [vmem:[%s304 + $0x48] sm:$0xff]
          %v593 = vld [vmem:[%s304 + $0x50] sm:$0xff]
          %v594 = vld [vmem:[%s304 + $0x58] sm:$0xff]
          %v595 = vld [vmem:[%s304 + $0x60] sm:$0xff]
          %v596 = vld [vmem:[%s304 + $0x68] sm:$0xff]
          %v597 = vld [vmem:[%s304 + $0x70] sm:$0xff]
          %v598 = vld [vmem:[%s304 + $0x78] sm:$0xff]
          %600 = vset.pattern.permute.xlu0 0
          %601 = vperm.xlu0 %600, %v583
          %v602 = vpop.permute.xlu0 %601
          %605 = vset.pattern.permute.xlu0 0
          %606 = vperm.xlu0 %605, %v584
          %v607 = vpop.permute.xlu0 %606
          %610 = vset.pattern.permute.xlu0 0
          %611 = vperm.xlu0 %610, %v585
          %v612 = vpop.permute.xlu0 %611
          %615 = vset.pattern.permute.xlu0 0
          %616 = vperm.xlu0 %615, %v586
          %v617 = vpop.permute.xlu0 %616
          %620 = vset.pattern.permute.xlu0 0
          %621 = vperm.xlu0 %620, %v587
          %v622 = vpop.permute.xlu0 %621
          %625 = vset.pattern.permute.xlu0 0
          %626 = vperm.xlu0 %625, %v588
          %v627 = vpop.permute.xlu0 %626
          %630 = vset.pattern.permute.xlu0 0
          %631 = vperm.xlu0 %630, %v589
          %v632 = vpop.permute.xlu0 %631
          %635 = vset.pattern.permute.xlu0 0
          %636 = vperm.xlu0 %635, %v590
          %v637 = vpop.permute.xlu0 %636
          %640 = vset.pattern.permute.xlu0 0
          %641 = vperm.xlu0 %640, %v591
          %v642 = vpop.permute.xlu0 %641
          %645 = vset.pattern.permute.xlu0 0
          %646 = vperm.xlu0 %645, %v592
          %v647 = vpop.permute.xlu0 %646
          %650 = vset.pattern.permute.xlu0 0
          %651 = vperm.xlu0 %650, %v593
          %v652 = vpop.permute.xlu0 %651
          %655 = vset.pattern.permute.xlu0 0
          %656 = vperm.xlu0 %655, %v594
          %v657 = vpop.permute.xlu0 %656
          %660 = vset.pattern.permute.xlu0 0
          %661 = vperm.xlu0 %660, %v595
          %v662 = vpop.permute.xlu0 %661
          %665 = vset.pattern.permute.xlu0 0
          %666 = vperm.xlu0 %665, %v596
          %v667 = vpop.permute.xlu0 %666
          %670 = vset.pattern.permute.xlu0 0
          %671 = vperm.xlu0 %670, %v597
          %v672 = vpop.permute.xlu0 %671
          %675 = vset.pattern.permute.xlu0 0
          %676 = vperm.xlu0 %675, %v598
          %v677 = vpop.permute.xlu0 %676
          %v679 = vmul.f32 %v567, %v602
          %v680 = vmul.f32 %v568, %v607
          %v681 = vmul.f32 %v569, %v612
          %v682 = vmul.f32 %v570, %v617
          %v683 = vmul.f32 %v571, %v622
          %v684 = vmul.f32 %v572, %v627
          %v685 = vmul.f32 %v573, %v632
          %v686 = vmul.f32 %v574, %v637
          %v687 = vmul.f32 %v575, %v642
          %v688 = vmul.f32 %v576, %v647
          %v689 = vmul.f32 %v577, %v652
          %v690 = vmul.f32 %v578, %v657
          %v691 = vmul.f32 %v579, %v662
          %v692 = vmul.f32 %v580, %v667
          %v693 = vmul.f32 %v581, %v672
          %v694 = vmul.f32 %v582, %v677
          %v695 = vpack.c.bf16 %v680, %v679
          %v696 = vpack.c.bf16 %v682, %v681
          %v697 = vpack.c.bf16 %v684, %v683
          %v698 = vpack.c.bf16 %v686, %v685
          %v699 = vpack.c.bf16 %v688, %v687
          %v700 = vpack.c.bf16 %v690, %v689
          %v701 = vpack.c.bf16 %v692, %v691
          %v702 = vpack.c.bf16 %v694, %v693
          %v703 = vld [vmem:[%s3] sm:$0xf]
          %v704 = vld [vmem:[%s3 + $0x4] sm:$0xf]
          %v705 = vld [vmem:[%s3 + $0x8] sm:$0xf]
          %v706 = vld [vmem:[%s3 + $0xc] sm:$0xf]
          %v707 = vld [vmem:[%s3 + $0x10] sm:$0xf]
          %v708 = vld [vmem:[%s3 + $0x14] sm:$0xf]
          %v709 = vld [vmem:[%s3 + $0x18] sm:$0xf]
          %v710 = vld [vmem:[%s3 + $0x1c] sm:$0xf]
          %v711 = vld [vmem:[%s3 + $0x20] sm:$0xf]
          %v712 = vld [vmem:[%s3 + $0x24] sm:$0xf]
          %v713 = vld [vmem:[%s3 + $0x28] sm:$0xf]
          %v714 = vld [vmem:[%s3 + $0x2c] sm:$0xf]
          %v715 = vld [vmem:[%s3 + $0x30] sm:$0xf]
          %v716 = vld [vmem:[%s3 + $0x34] sm:$0xf]
          %v717 = vld [vmem:[%s3 + $0x38] sm:$0xf]
          %v718 = vld [vmem:[%s3 + $0x3c] sm:$0xf]
          %v719 = vld [vmem:[%s4] sm:$0x1]
          %v721 = vlaneseq
          %v722 = vshrl.u32 %v721, 7
          %v723 = vsub.s32 0, %v722
          %v724 = vrot.slane %v719, %v723
          %v742 = vunpack.c.l.b16 %v703
          %v743 = vunpack.c.l.b16 %v704
          %v744 = vunpack.c.l.b16 %v705
          %v745 = vunpack.c.l.b16 %v706
          %v746 = vunpack.c.l.b16 %v707
          %v747 = vunpack.c.l.b16 %v708
          %v748 = vunpack.c.l.b16 %v709
          %v749 = vunpack.c.l.b16 %v710
          %v750 = vunpack.c.l.b16 %v711
          %v751 = vunpack.c.l.b16 %v712
          %v752 = vunpack.c.l.b16 %v713
          %v753 = vunpack.c.l.b16 %v714
          %v754 = vunpack.c.l.b16 %v715
          %v755 = vunpack.c.l.b16 %v716
          %v756 = vunpack.c.l.b16 %v717
          %v757 = vunpack.c.l.b16 %v718
          %v758 = vpack.c.b16 %v743, %v742
          %v759 = vpack.c.b16 %v745, %v744
          %v760 = vpack.c.b16 %v747, %v746
          %v761 = vpack.c.b16 %v749, %v748
          %v762 = vpack.c.b16 %v751, %v750
          %v763 = vpack.c.b16 %v753, %v752
          %v764 = vpack.c.b16 %v755, %v754
          %v765 = vpack.c.b16 %v757, %v756
          %774 = vmatprep.subr.bf16.mxu0 0
          %775 = vmatpush1.bf16.msra.mxu0 %v758
          %776 = vmatprep.subr.bf16.mxu0 0
          %777 = vmatpush1.bf16.msra.mxu0 %v759
          %778 = vmatprep.subr.bf16.mxu0 0
          %779 = vmatpush1.bf16.msra.mxu0 %v760
          %780 = vmatprep.subr.bf16.mxu0 0
          %781 = vmatpush1.bf16.msra.mxu0 %v761
          %782 = vmatprep.subr.bf16.mxu0 0
          %783 = vmatpush1.bf16.msra.mxu0 %v762
          %784 = vmatprep.subr.bf16.mxu0 0
          %785 = vmatpush1.bf16.msra.mxu0 %v763
          %786 = vmatprep.subr.bf16.mxu0 0
          %787 = vmatpush1.bf16.msra.mxu0 %v764
          %788 = vmatprep.subr.bf16.mxu0 0
          %789 = vmatpush1.bf16.msra.mxu0 %v765
          %790 = vmatprep.subr.bf16.mxu0 0
          %791 = vmatpush1.bf16.msra.mxu0 0
          %792 = vmatprep.subr.bf16.mxu0 0
          %793 = vmatpush1.bf16.msra.mxu0 0
          %794 = vmatprep.subr.bf16.mxu0 0
          %795 = vmatpush1.bf16.msra.mxu0 0
          %796 = vmatprep.subr.bf16.mxu0 0
          %797 = vmatpush1.bf16.msra.mxu0 0
          %798 = vmatprep.subr.bf16.mxu0 0
          %799 = vmatpush1.bf16.msra.mxu0 0
          %800 = vmatprep.subr.bf16.mxu0 0
          %801 = vmatpush1.bf16.msra.mxu0 0
          %802 = vmatprep.subr.bf16.mxu0 0
          %803 = vmatpush1.bf16.msra.mxu0 0
          %804 = vmatprep.subr.bf16.mxu0 0
          %805 = vmatpush1.bf16.msra.mxu0 0
          %806 = vmatprep.mubr.bf16.mxu0 0
          %807 = vmatmul.mubr.bf16.gmra.mrb[0].mxu0 %v695
          %v808 = vpop.f32.mrb[0].mxu0
          %v809 = vadd.f32 %v724, %v808
          %v810 = vpop.f32.mrb[0].mxu0
          %v811 = vpop.f32.mrb[0].mxu0
          %v812 = vadd.f32 %v724, %v811
          %v813 = vpop.f32.mrb[0].mxu0
          %814 = vmatprep.mubr.bf16.mxu0 0
          %815 = vmatmul.mubr.bf16.gmra.mrb[0].mxu0 %v696
          %v816 = vpop.f32.mrb[0].mxu0
          %v817 = vadd.f32 %v724, %v816
          %v818 = vpop.f32.mrb[0].mxu0
          %v819 = vpop.f32.mrb[0].mxu0
          %v820 = vadd.f32 %v724, %v819
          %v821 = vpop.f32.mrb[0].mxu0
          %822 = vmatprep.mubr.bf16.mxu0 0
          %823 = vmatmul.mubr.bf16.gmra.mrb[0].mxu0 %v697
          %v824 = vpop.f32.mrb[0].mxu0
          %v825 = vadd.f32 %v724, %v824
          %v826 = vpop.f32.mrb[0].mxu0
          %v827 = vpop.f32.mrb[0].mxu0
          %v828 = vadd.f32 %v724, %v827
          %v829 = vpop.f32.mrb[0].mxu0
          %830 = vmatprep.mubr.bf16.mxu0 0
          %831 = vmatmul.mubr.bf16.gmra.mrb[0].mxu0 %v698
          %v832 = vpop.f32.mrb[0].mxu0
          %v833 = vadd.f32 %v724, %v832
          %v834 = vpop.f32.mrb[0].mxu0
          %v835 = vpop.f32.mrb[0].mxu0
          %v836 = vadd.f32 %v724, %v835
          %v837 = vpop.f32.mrb[0].mxu0
          %838 = vmatprep.mubr.bf16.mxu0 0
          %839 = vmatmul.mubr.bf16.gmra.mrb[0].mxu0 %v699
          %v840 = vpop.f32.mrb[0].mxu0
          %v841 = vadd.f32 %v724, %v840
          %v842 = vpop.f32.mrb[0].mxu0
          %v843 = vpop.f32.mrb[0].mxu0
          %v844 = vadd.f32 %v724, %v843
          %v845 = vpop.f32.mrb[0].mxu0
          %846 = vmatprep.mubr.bf16.mxu0 0
          %847 = vmatmul.mubr.bf16.gmra.mrb[0].mxu0 %v700
          %v848 = vpop.f32.mrb[0].mxu0
          %v849 = vadd.f32 %v724, %v848
          %v850 = vpop.f32.mrb[0].mxu0
          %v851 = vpop.f32.mrb[0].mxu0
          %v852 = vadd.f32 %v724, %v851
          %v853 = vpop.f32.mrb[0].mxu0
          %854 = vmatprep.mubr.bf16.mxu0 0
          %855 = vmatmul.mubr.bf16.gmra.mrb[0].mxu0 %v701
          %v856 = vpop.f32.mrb[0].mxu0
          %v857 = vadd.f32 %v724, %v856
          %v858 = vpop.f32.mrb[0].mxu0
          %v859 = vpop.f32.mrb[0].mxu0
          %v860 = vadd.f32 %v724, %v859
          %v861 = vpop.f32.mrb[0].mxu0
          %862 = vmatprep.mubr.bf16.mxu0 0
          %863 = vmatmul.mubr.bf16.gmra.mrb[0].mxu0 %v702
          %v864 = vpop.f32.mrb[0].mxu0
          %v865 = vadd.f32 %v724, %v864
          %v866 = vpop.f32.mrb[0].mxu0
          %v867 = vpop.f32.mrb[0].mxu0
          %v868 = vadd.f32 %v724, %v867
          %v869 = vpop.f32.mrb[0].mxu0
          %870 = vdwg.mxu0
          %v871 = vmax.f32 %v809, 0.0
          %v872 = vmax.f32 %v812, 0.0
          %v873 = vmax.f32 %v817, 0.0
          %v874 = vmax.f32 %v820, 0.0
          %v875 = vmax.f32 %v825, 0.0
          %v876 = vmax.f32 %v828, 0.0
          %v877 = vmax.f32 %v833, 0.0
          %v878 = vmax.f32 %v836, 0.0
          %v879 = vmax.f32 %v841, 0.0
          %v880 = vmax.f32 %v844, 0.0
          %v881 = vmax.f32 %v849, 0.0
          %v882 = vmax.f32 %v852, 0.0
          %v883 = vmax.f32 %v857, 0.0
          %v884 = vmax.f32 %v860, 0.0
          %v885 = vmax.f32 %v865, 0.0
          %v886 = vmax.f32 %v868, 0.0
          %v887 = vpack.c.bf16 %v872, %v871
          %v888 = vpack.c.bf16 %v874, %v873
          %v889 = vpack.c.bf16 %v876, %v875
          %v890 = vpack.c.bf16 %v878, %v877
          %v891 = vpack.c.bf16 %v880, %v879
          %v892 = vpack.c.bf16 %v882, %v881
          %v893 = vpack.c.bf16 %v884, %v883
          %v894 = vpack.c.bf16 %v886, %v885
          %v903 = vunpack.c.l.b16 %v887
          %v904 = vunpack.c.h.b16 %v887
          %v905 = vunpack.c.l.b16 %v888
          %v906 = vunpack.c.h.b16 %v888
          %v907 = vunpack.c.l.b16 %v889
          %v908 = vunpack.c.h.b16 %v889
          %v909 = vunpack.c.l.b16 %v890
          %v910 = vunpack.c.h.b16 %v890
          %v911 = vunpack.c.l.b16 %v891
          %v912 = vunpack.c.h.b16 %v891
          %v913 = vunpack.c.l.b16 %v892
          %v914 = vunpack.c.h.b16 %v892
          %v915 = vunpack.c.l.b16 %v893
          %v916 = vunpack.c.h.b16 %v893
          %v917 = vunpack.c.l.b16 %v894
          %v918 = vunpack.c.h.b16 %v894
          %v919 = vpack.c.b16 %v903, %v903
          %v920 = vpack.c.b16 %v904, %v904
          %v921 = vpack.c.b16 %v905, %v905
          %v922 = vpack.c.b16 %v906, %v906
          %v923 = vpack.c.b16 %v907, %v907
          %v924 = vpack.c.b16 %v908, %v908
          %v925 = vpack.c.b16 %v909, %v909
          %v926 = vpack.c.b16 %v910, %v910
          %v927 = vpack.c.b16 %v911, %v911
          %v928 = vpack.c.b16 %v912, %v912
          %v929 = vpack.c.b16 %v913, %v913
          %v930 = vpack.c.b16 %v914, %v914
          %v931 = vpack.c.b16 %v915, %v915
          %v932 = vpack.c.b16 %v916, %v916
          %v933 = vpack.c.b16 %v917, %v917
          %v934 = vpack.c.b16 %v918, %v918
          %951 = vst [vmem:[%s310] sm:$0xf] %v919
          %952 = vst [vmem:[%s310 + $0x4] sm:$0xf] %v920
          %953 = vst [vmem:[%s310 + $0x8] sm:$0xf] %v921
          %954 = vst [vmem:[%s310 + $0xc] sm:$0xf] %v922
          %955 = vst [vmem:[%s310 + $0x10] sm:$0xf] %v923
          %956 = vst [vmem:[%s310 + $0x14] sm:$0xf] %v924
          %957 = vst [vmem:[%s310 + $0x18] sm:$0xf] %v925
          %958 = vst [vmem:[%s310 + $0x1c] sm:$0xf] %v926
          %959 = vst [vmem:[%s310 + $0x20] sm:$0xf] %v927
          %960 = vst [vmem:[%s310 + $0x24] sm:$0xf] %v928
          %961 = vst [vmem:[%s310 + $0x28] sm:$0xf] %v929
          %962 = vst [vmem:[%s310 + $0x2c] sm:$0xf] %v930
          %963 = vst [vmem:[%s310 + $0x30] sm:$0xf] %v931
          %964 = vst [vmem:[%s310 + $0x34] sm:$0xf] %v932
          %965 = vst [vmem:[%s310 + $0x38] sm:$0xf] %v933
          %966 = vst [vmem:[%s310 + $0x3c] sm:$0xf] %v934
        $region90: #{gcn_nodeflow_forward.2} parent=73 // pred_fallthru
          _
        %s967 = smul.u32 16, %s20
        %p968 = scmp.lt.s32.totalorder %s967, 31
        %s969 = scalar_select %p968, %s967, 31
        %s970 = smul.addr %s969, 4
        %s971 = scalar_lea.vmem %s5, %s970
        // Predicated region
        $region91: #{gcn_nodeflow_forward.2} parent=73 // pred_check
          %p972 = pneg %p163
        $region92: #{gcn_nodeflow_forward.2} parent=73 // pred_check_branch
          %974 = sbr.rel (%p972) target = $region94
        $region93: #{gcn_nodeflow_forward.2} parent=73 // pred_region
          %s975 = smul.u32 16, %s20
        $region94: #{gcn_nodeflow_forward.2} parent=73 // pred_fallthru
          _
      $region74: #{gcn_nodeflow_forward.2} parent=5 // pred_fallthru
        _
      %p976 = scmp.le.s32.totalorder 2, %s11
      // Predicated region
      $region95: #{gcn_nodeflow_forward.2} parent=5 // pred_check
        %p977 = pneg %p976
      $region96: #{gcn_nodeflow_forward.2} parent=5 // pred_check_branch
        %979 = sbr.rel (%p977) target = $region98
      $region97: #{gcn_nodeflow_forward.2} parent=5 // pred_region
        %s980 = ssub.s32 %s11, 2
        // Predicated region
        $region99: #{gcn_nodeflow_forward.2} parent=97 // pred_check
          %p981 = pneg %p169
        $region100: #{gcn_nodeflow_forward.2} parent=97 // pred_check_branch
          %983 = sbr.rel (%p981) target = $region102
        $region101: #{gcn_nodeflow_forward.2} parent=97 // pred_region
          %s984 = smul.u32 16, %s22
          %p985 = scmp.lt.s32.totalorder %s984, 31
          %s986 = scalar_select %p985, %s984, 31
          %s987 = smul.addr %s986, 4
          %s988 = scalar_lea.vmem %s5, %s987
        $region102: #{gcn_nodeflow_forward.2} parent=97 // pred_fallthru
          _
      $region98: #{gcn_nodeflow_forward.2} parent=5 // pred_fallthru
        _
    $region6: #{gcn_nodeflow_forward.2} parent=1 // loop_footer
      %s15 = sadd.s32 1, %s11
    $region7: #{gcn_nodeflow_forward.2} parent=1 // loop_footer_branch
      %10 = sbr.rel target = $region3
    $region8: #{gcn_nodeflow_forward.2} parent=1 // loop_exit
      _

// kernel: gcn_nodeflow_forward.3
$region0: #{gcn_nodeflow_forward.3}
  #allocation0 [shape = 'u32[]', space=smem, size = 0x4, offset = 0x4, fixed_abs, tag = 'smem constant byte address 0x4 - core index']
  #allocation1 [shape = 'u32[144,128]{1,0:T(1,128)}', space=vmem, size = 0x12000, scoped, tag = 'internal scratch']
  #allocation2 [shape = 'f32[128,128]{1,0:T(8,128)}', space=vmem, size = 0x10000, scoped, tag = 'scratch operand']
  %s0 = inlined_call_operand.vmem [shape: s8[256,256], index: 0, kind: input, shape index: {}]
  %s1 = inlined_call_operand.vmem [shape: bf16[256,128], index: 1, kind: input, shape index: {}]
  %s2 = inlined_call_operand.vmem [shape: f32[256,1], index: 2, kind: input, shape index: {}]
  %s3 = inlined_call_operand.vmem [shape: bf16[128,128], index: 3, kind: input, shape index: {}]
  %s4 = inlined_call_operand.vmem [shape: f32[1,128], index: 4, kind: input, shape index: {}]
  %s5 = inlined_call_operand.vmem [shape: f32[256,128], index: 5, kind: input, shape index: {}]
  %s6 = inlined_call_operand.vmem [shape: f32[256,128], index: 6, kind: output, shape index: {}]
  %s7 = sld [smem:[#allocation0]]
  $region107: #{gcn_nodeflow_forward.3} parent=0
    _
  %s9 = ssub.s32 1, %s7
  %s10 = scalar_select 0, %s9, %s7
  $region1: #{gcn_nodeflow_forward.3} parent=0
    #allocation3 [shape = 'u8[32768]{0}', space=vmem, size = 0x8000, scoped, tag = 'input window, operand 0']
    loop: start=0, step=1, limit=6
    $region2: #{gcn_nodeflow_forward.3} parent=1 // loop_pre_header
      _
    $region3: #{gcn_nodeflow_forward.3} parent=1 // loop_header
      %s12 = sphi 0, %s16
      %p13 = scmp.ge.s32.totalorder %s12, 6
      %s19 = sphi 0, %s31
      %s20 = sphi 0, %s27
      %s21 = sphi 0, %s19
      %s22 = sphi 0, %s20
      %s23 = sphi 0, %s21
      %s24 = sphi 0, %s22
      %s36 = sphi 0, %s38
      %s39 = sphi 0, %s36
      %s40 = sphi 0, %s39
      %s56 = sphi 0, %s40
      %s60 = sphi 0, %s60
      %s62 = sphi 0, %s60
      %s63 = sphi 0, %s62
      %s77 = sphi 0, %s63
      %s83 = sphi 0, %s85
      %s86 = sphi 0, %s83
      %s87 = sphi 0, %s86
      %s103 = sphi 0, %s87
      %s107 = sphi 0, %s107
      %s109 = sphi 0, %s107
      %s110 = sphi 0, %s109
      %s124 = sphi 0, %s110
      %s128 = sphi 0, %s128
      %s130 = sphi 0, %s128
      %s131 = sphi 0, %s130
      %s145 = sphi 0, %s131
      %s151 = sphi 0, %s153
      %s154 = sphi 0, %s151
      %s155 = sphi 0, %s154
      %s171 = sphi 0, %s155
      %s177 = sphi 0, %s179
      %s180 = sphi 0, %s177
      %s181 = sphi 0, %s180
      %s197 = sphi 0, %s181
    $region4: #{gcn_nodeflow_forward.3} parent=1 // loop_header_branch
      %15 = sbr.rel (%p13) target = $region8
    $region5: #{gcn_nodeflow_forward.3} parent=1 // loop_body
      %s17 = ssub.s32 %s12, 1
      %s18 = ssub.s32 %s12, 2
      %s25 = sadd.s32 1, %s20
      %p26 = scmp.ge.s32.totalorder %s25, 2
      %s27 = scalar_select %p26, 0, %s25
      %s28 = sadd.s32 1, %s19
      %s29 = scalar_select %p26, %s28, %s19
      %p30 = scmp.ge.s32.totalorder %s29, 2
      %s31 = scalar_select %p30, 0, %s29
      %s32 = ssub.s32 %s19, %s31
      %s33 = ssub.s32 %s20, %s27
      %s34 = sor.u32 %s32, %s33
      %p35 = scmp.eq.s32.totalorder %s34, 0
      %s37 = sadd.s32 %s36, 1
      %s38 = scalar_select %p35, %s36, %s37
      %p41 = pneg %p35
      %p42 = scmp.eq.s32.totalorder %s12, 3
      %p43 = por %p41, %p42
      %p44 = scmp.ne.s32.totalorder %s36, %s39
      %p45 = scmp.eq.s32.totalorder %s12, 0
      %p46 = por %p44, %p45
      %p47 = scmp.ne.s32.totalorder %s36, %s39
      %p48 = scmp.eq.s32.totalorder %s17, 3
      %p49 = por %p47, %p48
      %p50 = scmp.ne.s32.totalorder %s39, %s40
      %p51 = scmp.eq.s32.totalorder %s17, 0
      %p52 = por %p50, %p51
      %p53 = scmp.ne.s32.totalorder %s39, %s40
      %p54 = scmp.eq.s32.totalorder %s18, 3
      %p55 = por %p53, %p54
      %p57 = scmp.ne.s32.totalorder %s40, %s56
      %p58 = scmp.eq.s32.totalorder %s18, 0
      %p59 = por %p57, %p58
      %s61 = sadd.s32 %s60, 1
      %p64 = scmp.eq.s32.totalorder %s12, 3
      %p65 = scmp.ne.s32.totalorder %s60, %s62
      %p66 = scmp.eq.s32.totalorder %s12, 0
      %p67 = por %p65, %p66
      %p68 = scmp.ne.s32.totalorder %s60, %s62
      %p69 = scmp.eq.s32.totalorder %s17, 3
      %p70 = por %p68, %p69
      %p71 = scmp.ne.s32.totalorder %s62, %s63
      %p72 = scmp.eq.s32.totalorder %s17, 0
      %p73 = por %p71, %p72
      %p74 = scmp.ne.s32.totalorder %s62, %s63
      %p75 = scmp.eq.s32.totalorder %s18, 3
      %p76 = por %p74, %p75
      %p78 = scmp.ne.s32.totalorder %s63, %s77
      %p79 = scmp.eq.s32.totalorder %s18, 0
      %p80 = por %p78, %p79
      %s81 = ssub.s32 %s19, %s31
      %p82 = scmp.eq.s32.totalorder %s81, 0
      %s84 = sadd.s32 %s83, 1
      %s85 = scalar_select %p82, %s83, %s84
      %p88 = pneg %p82
      %p89 = scmp.eq.s32.totalorder %s12, 3
      %p90 = por %p88, %p89
      %p91 = scmp.ne.s32.totalorder %s83, %s86
      %p92 = scmp.eq.s32.totalorder %s12, 0
      %p93 = por %p91, %p92
      %p94 = scmp.ne.s32.totalorder %s83, %s86
      %p95 = scmp.eq.s32.totalorder %s17, 3
      %p96 = por %p94, %p95
      %p97 = scmp.ne.s32.totalorder %s86, %s87
      %p98 = scmp.eq.s32.totalorder %s17, 0
      %p99 = por %p97, %p98
      %p100 = scmp.ne.s32.totalorder %s86, %s87
      %p101 = scmp.eq.s32.totalorder %s18, 3
      %p102 = por %p100, %p101
      %p104 = scmp.ne.s32.totalorder %s87, %s103
      %p105 = scmp.eq.s32.totalorder %s18, 0
      %p106 = por %p104, %p105
      %s108 = sadd.s32 %s107, 1
      %p111 = scmp.eq.s32.totalorder %s12, 3
      %p112 = scmp.ne.s32.totalorder %s107, %s109
      %p113 = scmp.eq.s32.totalorder %s12, 0
      %p114 = por %p112, %p113
      %p115 = scmp.ne.s32.totalorder %s107, %s109
      %p116 = scmp.eq.s32.totalorder %s17, 3
      %p117 = por %p115, %p116
      %p118 = scmp.ne.s32.totalorder %s109, %s110
      %p119 = scmp.eq.s32.totalorder %s17, 0
      %p120 = por %p118, %p119
      %p121 = scmp.ne.s32.totalorder %s109, %s110
      %p122 = scmp.eq.s32.totalorder %s18, 3
      %p123 = por %p121, %p122
      %p125 = scmp.ne.s32.totalorder %s110, %s124
      %p126 = scmp.eq.s32.totalorder %s18, 0
      %p127 = por %p125, %p126
      %s129 = sadd.s32 %s128, 1
      %p132 = scmp.eq.s32.totalorder %s12, 3
      %p133 = scmp.ne.s32.totalorder %s128, %s130
      %p134 = scmp.eq.s32.totalorder %s12, 0
      %p135 = por %p133, %p134
      %p136 = scmp.ne.s32.totalorder %s128, %s130
      %p137 = scmp.eq.s32.totalorder %s17, 3
      %p138 = por %p136, %p137
      %p139 = scmp.ne.s32.totalorder %s130, %s131
      %p140 = scmp.eq.s32.totalorder %s17, 0
      %p141 = por %p139, %p140
      %p142 = scmp.ne.s32.totalorder %s130, %s131
      %p143 = scmp.eq.s32.totalorder %s18, 3
      %p144 = por %p142, %p143
      %p146 = scmp.ne.s32.totalorder %s131, %s145
      %p147 = scmp.eq.s32.totalorder %s18, 0
      %p148 = por %p146, %p147
      %s149 = ssub.s32 %s19, %s31
      %p150 = scmp.eq.s32.totalorder %s149, 0
      %s152 = sadd.s32 %s151, 1
      %s153 = scalar_select %p150, %s151, %s152
      %p156 = pneg %p150
      %p157 = scmp.eq.s32.totalorder %s12, 3
      %p158 = por %p156, %p157
      %p159 = scmp.ne.s32.totalorder %s151, %s154
      %p160 = scmp.eq.s32.totalorder %s12, 0
      %p161 = por %p159, %p160
      %p162 = scmp.ne.s32.totalorder %s151, %s154
      %p163 = scmp.eq.s32.totalorder %s17, 3
      %p164 = por %p162, %p163
      %p165 = scmp.ne.s32.totalorder %s154, %s155
      %p166 = scmp.eq.s32.totalorder %s17, 0
      %p167 = por %p165, %p166
      %p168 = scmp.ne.s32.totalorder %s154, %s155
      %p169 = scmp.eq.s32.totalorder %s18, 3
      %p170 = por %p168, %p169
      %p172 = scmp.ne.s32.totalorder %s155, %s171
      %p173 = scmp.eq.s32.totalorder %s18, 0
      %p174 = por %p172, %p173
      %s175 = ssub.s32 %s19, %s31
      %p176 = scmp.eq.s32.totalorder %s175, 0
      %s178 = sadd.s32 %s177, 1
      %s179 = scalar_select %p176, %s177, %s178
      %p182 = pneg %p176
      %p183 = scmp.eq.s32.totalorder %s12, 3
      %p184 = por %p182, %p183
      %p185 = scmp.ne.s32.totalorder %s177, %s180
      %p186 = scmp.eq.s32.totalorder %s12, 0
      %p187 = por %p185, %p186
      %p188 = scmp.ne.s32.totalorder %s177, %s180
      %p189 = scmp.eq.s32.totalorder %s17, 3
      %p190 = por %p188, %p189
      %p191 = scmp.ne.s32.totalorder %s180, %s181
      %p192 = scmp.eq.s32.totalorder %s17, 0
      %p193 = por %p191, %p192
      %p194 = scmp.ne.s32.totalorder %s180, %s181
      %p195 = scmp.eq.s32.totalorder %s18, 3
      %p196 = por %p194, %p195
      %p198 = scmp.ne.s32.totalorder %s181, %s197
      %p199 = scmp.eq.s32.totalorder %s18, 0
      %p200 = por %p198, %p199
      %p201 = scmp.le.s32.totalorder 1, %s12
      %p202 = scmp.lt.s32.totalorder %s12, 5
      %p203 = pnand %p201, %p202
      %p204 = pneg %p203
      // Predicated region
      $region9: #{gcn_nodeflow_forward.3} parent=5 // pred_check
        _
      $region10: #{gcn_nodeflow_forward.3} parent=5 // pred_check_branch
        %206 = sbr.rel (%p203) target = $region12
      $region11: #{gcn_nodeflow_forward.3} parent=5 // pred_region
        %s207 = ssub.s32 %s12, 1
        // Predicated region
        $region13: #{gcn_nodeflow_forward.3} parent=11 // pred_check
          %p208 = pneg %p73
        $region14: #{gcn_nodeflow_forward.3} parent=11 // pred_check_branch
          %210 = sbr.rel (%p208) target = $region16
        $region15: #{gcn_nodeflow_forward.3} parent=11 // pred_region
          _
        $region16: #{gcn_nodeflow_forward.3} parent=11 // pred_fallthru
          _
        // Predicated region
        $region17: #{gcn_nodeflow_forward.3} parent=11 // pred_check
          %p211 = pneg %p120
        $region18: #{gcn_nodeflow_forward.3} parent=11 // pred_check_branch
          %213 = sbr.rel (%p211) target = $region20
        $region19: #{gcn_nodeflow_forward.3} parent=11 // pred_region
          _
        $region20: #{gcn_nodeflow_forward.3} parent=11 // pred_fallthru
          _
        // Predicated region
        $region21: #{gcn_nodeflow_forward.3} parent=11 // pred_check
          %p214 = pneg %p141
        $region22: #{gcn_nodeflow_forward.3} parent=11 // pred_check_branch
          %216 = sbr.rel (%p214) target = $region24
        $region23: #{gcn_nodeflow_forward.3} parent=11 // pred_region
          _
        $region24: #{gcn_nodeflow_forward.3} parent=11 // pred_fallthru
          _
      $region12: #{gcn_nodeflow_forward.3} parent=5 // pred_fallthru
        _
      %p217 = scmp.lt.s32.totalorder %s12, 4
      // Predicated region
      $region25: #{gcn_nodeflow_forward.3} parent=5 // pred_check
        %p218 = pneg %p217
      $region26: #{gcn_nodeflow_forward.3} parent=5 // pred_check_branch
        %220 = sbr.rel (%p218) target = $region28
      $region27: #{gcn_nodeflow_forward.3} parent=5 // pred_region
        // Predicated region
        $region29: #{gcn_nodeflow_forward.3} parent=27 // pred_check
          %p221 = pneg %p46
        $region30: #{gcn_nodeflow_forward.3} parent=27 // pred_check_branch
          %223 = sbr.rel (%p221) target = $region32
        $region31: #{gcn_nodeflow_forward.3} parent=27 // pred_region
          %s224 = sand.u32 %s36, 1
          %s225 = sand.u32 %s36, 1
          %s226 = smul.addr %s225, 32
          %s227 = scalar_lea.vmem [#allocation3], %s226
          %s228 = smul.u32 4, %s19
          %s229 = smul.addr %s228, 2
          %s230 = sadd.s32 %s20, %s229
          %s231 = smul.addr %s230, 8
          %s232 = scalar_lea.vmem %s0, %s231
          // Predicated region
          $region33: #{gcn_nodeflow_forward.3} parent=31 // pred_check
            _
          $region34: #{gcn_nodeflow_forward.3} parent=31 // pred_check_branch
            %234 = sbr.rel (0) target = $region36
          $region35: #{gcn_nodeflow_forward.3} parent=31 // pred_region
            // Predicated region
            $region37: #{gcn_nodeflow_forward.3} parent=35 // pred_check
              _
            $region38: #{gcn_nodeflow_forward.3} parent=35 // pred_check_branch
              %236 = sbr.rel (0) target = $region40
            $region39: #{gcn_nodeflow_forward.3} parent=35 // pred_region
              // Predicated region
              $region52: #{gcn_nodeflow_forward.3} parent=39 // pred_check
                _
              $region53: #{gcn_nodeflow_forward.3} parent=39 // pred_check_branch
                %257 = sbr.rel (0) target = $region55
              $region54: #{gcn_nodeflow_forward.3} parent=39 // pred_region
                loop: start=0, step=1, limit=1
                $region56: #{gcn_nodeflow_forward.3} parent=54 // loop_pre_header
                  _
                $region57: #{gcn_nodeflow_forward.3} parent=54 // loop_header
                  %s259 = sphi 0, %s263
                  %p260 = scmp.ge.s32.totalorder %s259, 1
                  %s264 = sphi %s232, %s232
                  %s265 = sphi %s227, %s227
                $region58: #{gcn_nodeflow_forward.3} parent=54 // loop_header_branch
                  %262 = sbr.rel (%p260) target = $region62
                $region59: #{gcn_nodeflow_forward.3} parent=54 // loop_body
                  %v266 = vld [vmem:[%s264] sm:$0xff]
                  %267 = vst [vmem:[%s265] sm:$0xff] %v266
                  %v268 = vld [vmem:[%s264 + $0x10] sm:$0xff]
                  %269 = vst [vmem:[%s265 + $0x8] sm:$0xff] %v268
                  %v270 = vld [vmem:[%s264 + $0x20] sm:$0xff]
                  %271 = vst [vmem:[%s265 + $0x10] sm:$0xff] %v270
                  %v272 = vld [vmem:[%s264 + $0x30] sm:$0xff]
                  %273 = vst [vmem:[%s265 + $0x18] sm:$0xff] %v272
                $region60: #{gcn_nodeflow_forward.3} parent=54 // loop_footer
                  %s263 = sadd.s32 1, %s259
                $region61: #{gcn_nodeflow_forward.3} parent=54 // loop_footer_branch
                  %258 = sbr.rel target = $region57
                $region62: #{gcn_nodeflow_forward.3} parent=54 // loop_exit
                  _
              $region55: #{gcn_nodeflow_forward.3} parent=39 // pred_fallthru
                _
              // Predicated region
              $region63: #{gcn_nodeflow_forward.3} parent=39 // pred_check
                _
              $region64: #{gcn_nodeflow_forward.3} parent=39 // pred_check_branch
                %275 = sbr.rel target = $region66
              $region65: #{gcn_nodeflow_forward.3} parent=39 // pred_region
                _
              $region66: #{gcn_nodeflow_forward.3} parent=39 // pred_fallthru
                _
            $region40: #{gcn_nodeflow_forward.3} parent=35 // pred_fallthru
              _
            // Predicated region
            $region41: #{gcn_nodeflow_forward.3} parent=35 // pred_check
              _
            $region42: #{gcn_nodeflow_forward.3} parent=35 // pred_check_branch
              %238 = sbr.rel target = $region44
            $region43: #{gcn_nodeflow_forward.3} parent=35 // pred_region
              loop: start=0, step=1, limit=1
              $region45: #{gcn_nodeflow_forward.3} parent=43 // loop_pre_header
                _
              $region46: #{gcn_nodeflow_forward.3} parent=43 // loop_header
                %s241 = sphi 0, %s245
                %p242 = scmp.ge.s32.totalorder %s241, 1
                %s246 = sphi %s232, %s232
                %s247 = sphi %s227, %s227
              $region47: #{gcn_nodeflow_forward.3} parent=43 // loop_header_branch
                %244 = sbr.rel (%p242) target = $region51
              $region48: #{gcn_nodeflow_forward.3} parent=43 // loop_body
                %v248 = vld [vmem:[%s246] sm:$0xff]
                %249 = vst [vmem:[%s247] sm:$0xff] %v248
                %v250 = vld [vmem:[%s246 + $0x10] sm:$0xff]
                %251 = vst [vmem:[%s247 + $0x8] sm:$0xff] %v250
                %v252 = vld [vmem:[%s246 + $0x20] sm:$0xff]
                %253 = vst [vmem:[%s247 + $0x10] sm:$0xff] %v252
                %v254 = vld [vmem:[%s246 + $0x30] sm:$0xff]
                %255 = vst [vmem:[%s247 + $0x18] sm:$0xff] %v254
              $region49: #{gcn_nodeflow_forward.3} parent=43 // loop_footer
                %s245 = sadd.s32 1, %s241
              $region50: #{gcn_nodeflow_forward.3} parent=43 // loop_footer_branch
                %240 = sbr.rel target = $region46
              $region51: #{gcn_nodeflow_forward.3} parent=43 // loop_exit
                _
            $region44: #{gcn_nodeflow_forward.3} parent=35 // pred_fallthru
              _
          $region36: #{gcn_nodeflow_forward.3} parent=31 // pred_fallthru
            _
          %276 = vnop
        $region32: #{gcn_nodeflow_forward.3} parent=27 // pred_fallthru
          _
        // Predicated region
        $region67: #{gcn_nodeflow_forward.3} parent=27 // pred_check
          %p277 = pneg %p93
        $region68: #{gcn_nodeflow_forward.3} parent=27 // pred_check_branch
          %279 = sbr.rel (%p277) target = $region70
        $region69: #{gcn_nodeflow_forward.3} parent=27 // pred_region
          %s280 = smul.u32 16, %s19
          %p281 = scmp.lt.s32.totalorder %s280, 31
          %s282 = scalar_select %p281, %s280, 31
          %s283 = smul.addr %s282, 8
          %s284 = scalar_lea.vmem %s2, %s283
          %s285 = smul.u32 16, %s19
        $region70: #{gcn_nodeflow_forward.3} parent=27 // pred_fallthru
          _
        // Predicated region
        $region71: #{gcn_nodeflow_forward.3} parent=27 // pred_check
          %p286 = pneg %p161
        $region72: #{gcn_nodeflow_forward.3} parent=27 // pred_check_branch
          %288 = sbr.rel (%p286) target = $region74
        $region73: #{gcn_nodeflow_forward.3} parent=27 // pred_region
          %s289 = smul.u32 16, %s19
          %p290 = scmp.lt.s32.totalorder %s289, 31
          %s291 = scalar_select %p290, %s289, 31
          %s292 = smul.addr %s291, 8
          %s293 = scalar_lea.vmem %s5, %s292
          %s294 = smul.u32 16, %s19
        $region74: #{gcn_nodeflow_forward.3} parent=27 // pred_fallthru
          _
      $region28: #{gcn_nodeflow_forward.3} parent=5 // pred_fallthru
        _
      %p295 = scmp.le.s32.totalorder 1, %s12
      %p296 = scmp.lt.s32.totalorder %s12, 5
      %p297 = pnand %p295, %p296
      %p298 = pneg %p297
      // Predicated region
      $region75: #{gcn_nodeflow_forward.3} parent=5 // pred_check
        _
      $region76: #{gcn_nodeflow_forward.3} parent=5 // pred_check_branch
        %300 = sbr.rel (%p297) target = $region78
      $region77: #{gcn_nodeflow_forward.3} parent=5 // pred_region
        %s301 = ssub.s32 %s12, 1
        %s302 = sand.u32 %s39, 1
        %s303 = sand.u32 %s39, 1
        %s304 = smul.addr %s303, 32
        %s305 = scalar_lea.vmem [#allocation3], %s304
        // Predicated region
        $region79: #{gcn_nodeflow_forward.3} parent=77 // pred_check
          %p306 = pneg %p52
        $region80: #{gcn_nodeflow_forward.3} parent=77 // pred_check_branch
          %308 = sbr.rel (%p306) target = $region82
        $region81: #{gcn_nodeflow_forward.3} parent=77 // pred_region
          _
        $region82: #{gcn_nodeflow_forward.3} parent=77 // pred_fallthru
          _
        %s309 = sand.u32 %s39, 1
        %s310 = sand.u32 %s39, 1
        %s311 = smul.addr %s310, 32
        %s312 = scalar_lea.vmem [#allocation3], %s311
        %p313 = pneg %p52
        %p314 = pneg %p49
        %p315 = pneg %p73
        %p316 = pneg %p70
        %s317 = smul.u32 16, %s21
        %p318 = scmp.lt.s32.totalorder %s317, 31
        %s319 = scalar_select %p318, %s317, 31
        %s320 = smul.addr %s319, 8
        %s321 = scalar_lea.vmem %s2, %s320
        %p322 = pneg %p99
        %p323 = pneg %p96
        %p324 = pneg %p120
        %p325 = pneg %p117
        %p326 = pneg %p141
        %p327 = pneg %p138
        %s328 = smul.u32 16, %s21
        %p329 = scmp.lt.s32.totalorder %s328, 31
        %s330 = scalar_select %p329, %s328, 31
        %s331 = smul.addr %s330, 8
        %s332 = scalar_lea.vmem %s5, %s331
        %p333 = pneg %p167
        %p334 = pneg %p164
        %p335 = pneg %p193
        %p336 = pneg %p190
        %s337 = smul.u32 16, %s21
        %p338 = scmp.lt.s32.totalorder %s337, 31
        %s339 = scalar_select %p338, %s337, 31
        %s340 = smul.addr %s339, 8
        %s341 = scalar_lea.vmem %s6, %s340
        %s342 = smul.u32 4, %s21
        %s343 = smul.u32 16, %s21
        %p344 = scmp.lt.s32.totalorder %s343, 31
        %s345 = scalar_select %p344, %s343, 31
        %s346 = smul.addr %s345, 8
        %s347 = scalar_lea.vmem %s2, %s346
        %s348 = smul.u32 16, %s21
        %s349 = smul.u32 16, %s21
        %p350 = scmp.lt.s32.totalorder %s349, 31
        %s351 = scalar_select %p350, %s349, 31
        %s352 = smul.addr %s351, 8
        %s353 = scalar_lea.vmem %s5, %s352
        %s354 = smul.u32 16, %s21
        %s355 = smul.u32 16, %s21
        %p356 = scmp.lt.s32.totalorder %s355, 31
        %s357 = scalar_select %p356, %s355, 31
        %s358 = smul.addr %s357, 8
        %s359 = scalar_lea.vmem %s6, %s358
        %s360 = smul.u32 16, %s21
        %s362 = smul.u32 %s22, 128
        %s363 = sshra.s32 %s362, 3
        %s364 = sand.u32 %s362, 7
        %s365 = smul.addr %s363, 4
        %s366 = scalar_lea.vmem %s1, %s365
        %v367 = vld [vmem:[%s366] sm:$0xf]
        %v368 = vld [vmem:[%s366 + $0x4] sm:$0xf]
        %v369 = vld [vmem:[%s366 + $0x8] sm:$0xf]
        %v370 = vld [vmem:[%s366 + $0xc] sm:$0xf]
        %v371 = vld [vmem:[%s366 + $0x10] sm:$0xf]
        %v372 = vld [vmem:[%s366 + $0x14] sm:$0xf]
        %v373 = vld [vmem:[%s366 + $0x18] sm:$0xf]
        %v374 = vld [vmem:[%s366 + $0x1c] sm:$0xf]
        %v375 = vld [vmem:[%s366 + $0x20] sm:$0xf]
        %v376 = vld [vmem:[%s366 + $0x24] sm:$0xf]
        %v377 = vld [vmem:[%s366 + $0x28] sm:$0xf]
        %v378 = vld [vmem:[%s366 + $0x2c] sm:$0xf]
        %v379 = vld [vmem:[%s366 + $0x30] sm:$0xf]
        %v380 = vld [vmem:[%s366 + $0x34] sm:$0xf]
        %v381 = vld [vmem:[%s366 + $0x38] sm:$0xf]
        %v382 = vld [vmem:[%s366 + $0x3c] sm:$0xf]
        %v383 = vld [vmem:[%s305] sm:$0xff]
        %v384 = vld [vmem:[%s305 + $0x8] sm:$0xff]
        %v385 = vld [vmem:[%s305 + $0x10] sm:$0xff]
        %v386 = vld [vmem:[%s305 + $0x18] sm:$0xff]
        %v387 = vunpack.c.l.s8.bf16 %v383
        %v388 = vunpack.c.h.s8.bf16 %v383
        %v389 = vunpack.c.l.s8.bf16 %v384
        %v390 = vunpack.c.h.s8.bf16 %v384
        %v391 = vunpack.c.l.s8.bf16 %v385
        %v392 = vunpack.c.h.s8.bf16 %v385
        %v393 = vunpack.c.l.s8.bf16 %v386
        %v394 = vunpack.c.h.s8.bf16 %v386
        %v411 = vunpack.c.l.b16 %v367
        %v412 = vunpack.c.l.b16 %v368
        %v413 = vunpack.c.l.b16 %v369
        %v414 = vunpack.c.l.b16 %v370
        %v415 = vunpack.c.l.b16 %v371
        %v416 = vunpack.c.l.b16 %v372
        %v417 = vunpack.c.l.b16 %v373
        %v418 = vunpack.c.l.b16 %v374
        %v419 = vunpack.c.l.b16 %v375
        %v420 = vunpack.c.l.b16 %v376
        %v421 = vunpack.c.l.b16 %v377
        %v422 = vunpack.c.l.b16 %v378
        %v423 = vunpack.c.l.b16 %v379
        %v424 = vunpack.c.l.b16 %v380
        %v425 = vunpack.c.l.b16 %v381
        %v426 = vunpack.c.l.b16 %v382
        %v427 = vpack.c.b16 %v412, %v411
        %v428 = vpack.c.b16 %v414, %v413
        %v429 = vpack.c.b16 %v416, %v415
        %v430 = vpack.c.b16 %v418, %v417
        %v431 = vpack.c.b16 %v420, %v419
        %v432 = vpack.c.b16 %v422, %v421
        %v433 = vpack.c.b16 %v424, %v423
        %v434 = vpack.c.b16 %v426, %v425
        %443 = vmatprep.subr.bf16.mxu0 0
        %444 = vmatpush1.bf16.msra.mxu0 %v427
        %445 = vmatprep.subr.bf16.mxu0 0
        %446 = vmatpush1.bf16.msra.mxu0 %v428
        %447 = vmatprep.subr.bf16.mxu0 0
        %448 = vmatpush1.bf16.msra.mxu0 %v429
        %449 = vmatprep.subr.bf16.mxu0 0
        %450 = vmatpush1.bf16.msra.mxu0 %v430
        %451 = vmatprep.subr.bf16.mxu0 0
        %452 = vmatpush1.bf16.msra.mxu0 %v431
        %453 = vmatprep.subr.bf16.mxu0 0
        %454 = vmatpush1.bf16.msra.mxu0 %v432
        %455 = vmatprep.subr.bf16.mxu0 0
        %456 = vmatpush1.bf16.msra.mxu0 %v433
        %457 = vmatprep.subr.bf16.mxu0 0
        %458 = vmatpush1.bf16.msra.mxu0 %v434
        %459 = vmatprep.subr.bf16.mxu0 0
        %460 = vmatpush1.bf16.msra.mxu0 0
        %461 = vmatprep.subr.bf16.mxu0 0
        %462 = vmatpush1.bf16.msra.mxu0 0
        %463 = vmatprep.subr.bf16.mxu0 0
        %464 = vmatpush1.bf16.msra.mxu0 0
        %465 = vmatprep.subr.bf16.mxu0 0
        %466 = vmatpush1.bf16.msra.mxu0 0
        %467 = vmatprep.subr.bf16.mxu0 0
        %468 = vmatpush1.bf16.msra.mxu0 0
        %469 = vmatprep.subr.bf16.mxu0 0
        %470 = vmatpush1.bf16.msra.mxu0 0
        %471 = vmatprep.subr.bf16.mxu0 0
        %472 = vmatpush1.bf16.msra.mxu0 0
        %473 = vmatprep.subr.bf16.mxu0 0
        %474 = vmatpush1.bf16.msra.mxu0 0
        %475 = vmatprep.mubr.bf16.mxu0 0
        %476 = vmatmul.mubr.bf16.gmra.mrb[0].mxu0 %v387
        %v477 = vpop.f32.mrb[0].mxu0
        %v478 = vadd.f32 0.0, %v477
        %v479 = vpop.f32.mrb[0].mxu0
        %v480 = vpop.f32.mrb[0].mxu0
        %v481 = vadd.f32 0.0, %v480
        %v482 = vpop.f32.mrb[0].mxu0
        %483 = vmatprep.mubr.bf16.mxu0 0
        %484 = vmatmul.mubr.bf16.gmra.mrb[0].mxu0 %v388
        %v485 = vpop.f32.mrb[0].mxu0
        %v486 = vadd.f32 0.0, %v485
        %v487 = vpop.f32.mrb[0].mxu0
        %v488 = vpop.f32.mrb[0].mxu0
        %v489 = vadd.f32 0.0, %v488
        %v490 = vpop.f32.mrb[0].mxu0
        %491 = vmatprep.mubr.bf16.mxu0 0
        %492 = vmatmul.mubr.bf16.gmra.mrb[0].mxu0 %v389
        %v493 = vpop.f32.mrb[0].mxu0
        %v494 = vadd.f32 0.0, %v493
        %v495 = vpop.f32.mrb[0].mxu0
        %v496 = vpop.f32.mrb[0].mxu0
        %v497 = vadd.f32 0.0, %v496
        %v498 = vpop.f32.mrb[0].mxu0
        %499 = vmatprep.mubr.bf16.mxu0 0
        %500 = vmatmul.mubr.bf16.gmra.mrb[0].mxu0 %v390
        %v501 = vpop.f32.mrb[0].mxu0
        %v502 = vadd.f32 0.0, %v501
        %v503 = vpop.f32.mrb[0].mxu0
        %v504 = vpop.f32.mrb[0].mxu0
        %v505 = vadd.f32 0.0, %v504
        %v506 = vpop.f32.mrb[0].mxu0
        %507 = vmatprep.mubr.bf16.mxu0 0
        %508 = vmatmul.mubr.bf16.gmra.mrb[0].mxu0 %v391
        %v509 = vpop.f32.mrb[0].mxu0
        %v510 = vadd.f32 0.0, %v509
        %v511 = vpop.f32.mrb[0].mxu0
        %v512 = vpop.f32.mrb[0].mxu0
        %v513 = vadd.f32 0.0, %v512
        %v514 = vpop.f32.mrb[0].mxu0
        %515 = vmatprep.mubr.bf16.mxu0 0
        %516 = vmatmul.mubr.bf16.gmra.mrb[0].mxu0 %v392
        %v517 = vpop.f32.mrb[0].mxu0
        %v518 = vadd.f32 0.0, %v517
        %v519 = vpop.f32.mrb[0].mxu0
        %v520 = vpop.f32.mrb[0].mxu0
        %v521 = vadd.f32 0.0, %v520
        %v522 = vpop.f32.mrb[0].mxu0
        %523 = vmatprep.mubr.bf16.mxu0 0
        %524 = vmatmul.mubr.bf16.gmra.mrb[0].mxu0 %v393
        %v525 = vpop.f32.mrb[0].mxu0
        %v526 = vadd.f32 0.0, %v525
        %v527 = vpop.f32.mrb[0].mxu0
        %v528 = vpop.f32.mrb[0].mxu0
        %v529 = vadd.f32 0.0, %v528
        %v530 = vpop.f32.mrb[0].mxu0
        %531 = vmatprep.mubr.bf16.mxu0 0
        %532 = vmatmul.mubr.bf16.gmra.mrb[0].mxu0 %v394
        %v533 = vpop.f32.mrb[0].mxu0
        %v534 = vadd.f32 0.0, %v533
        %v535 = vpop.f32.mrb[0].mxu0
        %v536 = vpop.f32.mrb[0].mxu0
        %v537 = vadd.f32 0.0, %v536
        %v538 = vpop.f32.mrb[0].mxu0
        %539 = vdwg.mxu0
        %p540 = scmp.eq.s32.totalorder %s22, 0
        // Predicated region
        $region83: #{gcn_nodeflow_forward.3} parent=77 // pred_check
          %p541 = pneg %p540
        $region84: #{gcn_nodeflow_forward.3} parent=77 // pred_check_branch
          %543 = sbr.rel (%p541) target = $region86
        $region85: #{gcn_nodeflow_forward.3} parent=77 // pred_region
          %544 = vst [vmem:[#allocation2] sm:$0xff] %v478
          %545 = vst [vmem:[#allocation2 + $0x8] sm:$0xff] %v481
          %546 = vst [vmem:[#allocation2 + $0x10] sm:$0xff] %v486
          %547 = vst [vmem:[#allocation2 + $0x18] sm:$0xff] %v489
          %548 = vst [vmem:[#allocation2 + $0x20] sm:$0xff] %v494
          %549 = vst [vmem:[#allocation2 + $0x28] sm:$0xff] %v497
          %550 = vst [vmem:[#allocation2 + $0x30] sm:$0xff] %v502
          %551 = vst [vmem:[#allocation2 + $0x38] sm:$0xff] %v505
          %552 = vst [vmem:[#allocation2 + $0x40] sm:$0xff] %v510
          %553 = vst [vmem:[#allocation2 + $0x48] sm:$0xff] %v513
          %554 = vst [vmem:[#allocation2 + $0x50] sm:$0xff] %v518
          %555 = vst [vmem:[#allocation2 + $0x58] sm:$0xff] %v521
          %556 = vst [vmem:[#allocation2 + $0x60] sm:$0xff] %v526
          %557 = vst [vmem:[#allocation2 + $0x68] sm:$0xff] %v529
          %558 = vst [vmem:[#allocation2 + $0x70] sm:$0xff] %v534
          %559 = vst [vmem:[#allocation2 + $0x78] sm:$0xff] %v537
        $region86: #{gcn_nodeflow_forward.3} parent=77 // pred_fallthru
          _
        %p560 = scmp.gt.s32.totalorder %s22, 0
        // Predicated region
        $region87: #{gcn_nodeflow_forward.3} parent=77 // pred_check
          %p561 = pneg %p560
        $region88: #{gcn_nodeflow_forward.3} parent=77 // pred_check_branch
          %563 = sbr.rel (%p561) target = $region90
        $region89: #{gcn_nodeflow_forward.3} parent=77 // pred_region
          %v564 = vld [vmem:[#allocation2] sm:$0xff]
          %v565 = vld [vmem:[#allocation2 + $0x8] sm:$0xff]
          %v566 = vld [vmem:[#allocation2 + $0x10] sm:$0xff]
          %v567 = vld [vmem:[#allocation2 + $0x18] sm:$0xff]
          %v568 = vld [vmem:[#allocation2 + $0x20] sm:$0xff]
          %v569 = vld [vmem:[#allocation2 + $0x28] sm:$0xff]
          %v570 = vld [vmem:[#allocation2 + $0x30] sm:$0xff]
          %v571 = vld [vmem:[#allocation2 + $0x38] sm:$0xff]
          %v572 = vld [vmem:[#allocation2 + $0x40] sm:$0xff]
          %v573 = vld [vmem:[#allocation2 + $0x48] sm:$0xff]
          %v574 = vld [vmem:[#allocation2 + $0x50] sm:$0xff]
          %v575 = vld [vmem:[#allocation2 + $0x58] sm:$0xff]
          %v576 = vld [vmem:[#allocation2 + $0x60] sm:$0xff]
          %v577 = vld [vmem:[#allocation2 + $0x68] sm:$0xff]
          %v578 = vld [vmem:[#allocation2 + $0x70] sm:$0xff]
          %v579 = vld [vmem:[#allocation2 + $0x78] sm:$0xff]
          %v580 = vadd.f32 %v564, %v478
          %v581 = vadd.f32 %v565, %v481
          %v582 = vadd.f32 %v566, %v486
          %v583 = vadd.f32 %v567, %v489
          %v584 = vadd.f32 %v568, %v494
          %v585 = vadd.f32 %v569, %v497
          %v586 = vadd.f32 %v570, %v502
          %v587 = vadd.f32 %v571, %v505
          %v588 = vadd.f32 %v572, %v510
          %v589 = vadd.f32 %v573, %v513
          %v590 = vadd.f32 %v574, %v518
          %v591 = vadd.f32 %v575, %v521
          %v592 = vadd.f32 %v576, %v526
          %v593 = vadd.f32 %v577, %v529
          %v594 = vadd.f32 %v578, %v534
          %v595 = vadd.f32 %v579, %v537
          %596 = vst [vmem:[#allocation2] sm:$0xff] %v580
          %597 = vst [vmem:[#allocation2 + $0x8] sm:$0xff] %v581
          %598 = vst [vmem:[#allocation2 + $0x10] sm:$0xff] %v582
          %599 = vst [vmem:[#allocation2 + $0x18] sm:$0xff] %v583
          %600 = vst [vmem:[#allocation2 + $0x20] sm:$0xff] %v584
          %601 = vst [vmem:[#allocation2 + $0x28] sm:$0xff] %v585
          %602 = vst [vmem:[#allocation2 + $0x30] sm:$0xff] %v586
          %603 = vst [vmem:[#allocation2 + $0x38] sm:$0xff] %v587
          %604 = vst [vmem:[#allocation2 + $0x40] sm:$0xff] %v588
          %605 = vst [vmem:[#allocation2 + $0x48] sm:$0xff] %v589
          %606 = vst [vmem:[#allocation2 + $0x50] sm:$0xff] %v590
          %607 = vst [vmem:[#allocation2 + $0x58] sm:$0xff] %v591
          %608 = vst [vmem:[#allocation2 + $0x60] sm:$0xff] %v592
          %609 = vst [vmem:[#allocation2 + $0x68] sm:$0xff] %v593
          %610 = vst [vmem:[#allocation2 + $0x70] sm:$0xff] %v594
          %611 = vst [vmem:[#allocation2 + $0x78] sm:$0xff] %v595
        $region90: #{gcn_nodeflow_forward.3} parent=77 // pred_fallthru
          _
        %p612 = scmp.eq.s32.totalorder %s22, 1
        // Predicated region
        $region91: #{gcn_nodeflow_forward.3} parent=77 // pred_check
          %p613 = pneg %p612
        $region92: #{gcn_nodeflow_forward.3} parent=77 // pred_check_branch
          %615 = sbr.rel (%p613) target = $region94
        $region93: #{gcn_nodeflow_forward.3} parent=77 // pred_region
          %v616 = vld [vmem:[#allocation2] sm:$0xff]
          %v617 = vld [vmem:[#allocation2 + $0x8] sm:$0xff]
          %v618 = vld [vmem:[#allocation2 + $0x10] sm:$0xff]
          %v619 = vld [vmem:[#allocation2 + $0x18] sm:$0xff]
          %v620 = vld [vmem:[#allocation2 + $0x20] sm:$0xff]
          %v621 = vld [vmem:[#allocation2 + $0x28] sm:$0xff]
          %v622 = vld [vmem:[#allocation2 + $0x30] sm:$0xff]
          %v623 = vld [vmem:[#allocation2 + $0x38] sm:$0xff]
          %v624 = vld [vmem:[#allocation2 + $0x40] sm:$0xff]
          %v625 = vld [vmem:[#allocation2 + $0x48] sm:$0xff]
          %v626 = vld [vmem:[#allocation2 + $0x50] sm:$0xff]
          %v627 = vld [vmem:[#allocation2 + $0x58] sm:$0xff]
          %v628 = vld [vmem:[#allocation2 + $0x60] sm:$0xff]
          %v629 = vld [vmem:[#allocation2 + $0x68] sm:$0xff]
          %v630 = vld [vmem:[#allocation2 + $0x70] sm:$0xff]
          %v631 = vld [vmem:[#allocation2 + $0x78] sm:$0xff]
          %v632 = vld [vmem:[%s347] sm:$0xff]
          %v633 = vld [vmem:[%s347 + $0x8] sm:$0xff]
          %v634 = vld [vmem:[%s347 + $0x10] sm:$0xff]
          %v635 = vld [vmem:[%s347 + $0x18] sm:$0xff]
          %v636 = vld [vmem:[%s347 + $0x20] sm:$0xff]
          %v637 = vld [vmem:[%s347 + $0x28] sm:$0xff]
          %v638 = vld [vmem:[%s347 + $0x30] sm:$0xff]
          %v639 = vld [vmem:[%s347 + $0x38] sm:$0xff]
          %v640 = vld [vmem:[%s347 + $0x40] sm:$0xff]
          %v641 = vld [vmem:[%s347 + $0x48] sm:$0xff]
          %v642 = vld [vmem:[%s347 + $0x50] sm:$0xff]
          %v643 = vld [vmem:[%s347 + $0x58] sm:$0xff]
          %v644 = vld [vmem:[%s347 + $0x60] sm:$0xff]
          %v645 = vld [vmem:[%s347 + $0x68] sm:$0xff]
          %v646 = vld [vmem:[%s347 + $0x70] sm:$0xff]
          %v647 = vld [vmem:[%s347 + $0x78] sm:$0xff]
          %649 = vset.pattern.permute.xlu0 0
          %650 = vperm.xlu0 %649, %v632
          %v651 = vpop.permute.xlu0 %650
          %654 = vset.pattern.permute.xlu0 0
          %655 = vperm.xlu0 %654, %v633
          %v656 = vpop.permute.xlu0 %655
          %659 = vset.pattern.permute.xlu0 0
          %660 = vperm.xlu0 %659, %v634
          %v661 = vpop.permute.xlu0 %660
          %664 = vset.pattern.permute.xlu0 0
          %665 = vperm.xlu0 %664, %v635
          %v666 = vpop.permute.xlu0 %665
          %669 = vset.pattern.permute.xlu0 0
          %670 = vperm.xlu0 %669, %v636
          %v671 = vpop.permute.xlu0 %670
          %674 = vset.pattern.permute.xlu0 0
          %675 = vperm.xlu0 %674, %v637
          %v676 = vpop.permute.xlu0 %675
          %679 = vset.pattern.permute.xlu0 0
          %680 = vperm.xlu0 %679, %v638
          %v681 = vpop.permute.xlu0 %680
          %684 = vset.pattern.permute.xlu0 0
          %685 = vperm.xlu0 %684, %v639
          %v686 = vpop.permute.xlu0 %685
          %689 = vset.pattern.permute.xlu0 0
          %690 = vperm.xlu0 %689, %v640
          %v691 = vpop.permute.xlu0 %690
          %694 = vset.pattern.permute.xlu0 0
          %695 = vperm.xlu0 %694, %v641
          %v696 = vpop.permute.xlu0 %695
          %699 = vset.pattern.permute.xlu0 0
          %700 = vperm.xlu0 %699, %v642
          %v701 = vpop.permute.xlu0 %700
          %704 = vset.pattern.permute.xlu0 0
          %705 = vperm.xlu0 %704, %v643
          %v706 = vpop.permute.xlu0 %705
          %709 = vset.pattern.permute.xlu0 0
          %710 = vperm.xlu0 %709, %v644
          %v711 = vpop.permute.xlu0 %710
          %714 = vset.pattern.permute.xlu0 0
          %715 = vperm.xlu0 %714, %v645
          %v716 = vpop.permute.xlu0 %715
          %719 = vset.pattern.permute.xlu0 0
          %720 = vperm.xlu0 %719, %v646
          %v721 = vpop.permute.xlu0 %720
          %724 = vset.pattern.permute.xlu0 0
          %725 = vperm.xlu0 %724, %v647
          %v726 = vpop.permute.xlu0 %725
          %v728 = vmul.f32 %v616, %v651
          %v729 = vmul.f32 %v617, %v656
          %v730 = vmul.f32 %v618, %v661
          %v731 = vmul.f32 %v619, %v666
          %v732 = vmul.f32 %v620, %v671
          %v733 = vmul.f32 %v621, %v676
          %v734 = vmul.f32 %v622, %v681
          %v735 = vmul.f32 %v623, %v686
          %v736 = vmul.f32 %v624, %v691
          %v737 = vmul.f32 %v625, %v696
          %v738 = vmul.f32 %v626, %v701
          %v739 = vmul.f32 %v627, %v706
          %v740 = vmul.f32 %v628, %v711
          %v741 = vmul.f32 %v629, %v716
          %v742 = vmul.f32 %v630, %v721
          %v743 = vmul.f32 %v631, %v726
          %v744 = vpack.c.bf16 %v729, %v728
          %v745 = vpack.c.bf16 %v731, %v730
          %v746 = vpack.c.bf16 %v733, %v732
          %v747 = vpack.c.bf16 %v735, %v734
          %v748 = vpack.c.bf16 %v737, %v736
          %v749 = vpack.c.bf16 %v739, %v738
          %v750 = vpack.c.bf16 %v741, %v740
          %v751 = vpack.c.bf16 %v743, %v742
          %v752 = vld [vmem:[%s3] sm:$0xf]
          %v753 = vld [vmem:[%s3 + $0x4] sm:$0xf]
          %v754 = vld [vmem:[%s3 + $0x8] sm:$0xf]
          %v755 = vld [vmem:[%s3 + $0xc] sm:$0xf]
          %v756 = vld [vmem:[%s3 + $0x10] sm:$0xf]
          %v757 = vld [vmem:[%s3 + $0x14] sm:$0xf]
          %v758 = vld [vmem:[%s3 + $0x18] sm:$0xf]
          %v759 = vld [vmem:[%s3 + $0x1c] sm:$0xf]
          %v760 = vld [vmem:[%s3 + $0x20] sm:$0xf]
          %v761 = vld [vmem:[%s3 + $0x24] sm:$0xf]
          %v762 = vld [vmem:[%s3 + $0x28] sm:$0xf]
          %v763 = vld [vmem:[%s3 + $0x2c] sm:$0xf]
          %v764 = vld [vmem:[%s3 + $0x30] sm:$0xf]
          %v765 = vld [vmem:[%s3 + $0x34] sm:$0xf]
          %v766 = vld [vmem:[%s3 + $0x38] sm:$0xf]
          %v767 = vld [vmem:[%s3 + $0x3c] sm:$0xf]
          %v768 = vld [vmem:[%s4] sm:$0x1]
          %v770 = vlaneseq
          %v771 = vshrl.u32 %v770, 7
          %v772 = vsub.s32 0, %v771
          %v773 = vrot.slane %v768, %v772
          %v791 = vunpack.c.l.b16 %v752
          %v792 = vunpack.c.l.b16 %v753
          %v793 = vunpack.c.l.b16 %v754
          %v794 = vunpack.c.l.b16 %v755
          %v795 = vunpack.c.l.b16 %v756
          %v796 = vunpack.c.l.b16 %v757
          %v797 = vunpack.c.l.b16 %v758
          %v798 = vunpack.c.l.b16 %v759
          %v799 = vunpack.c.l.b16 %v760
          %v800 = vunpack.c.l.b16 %v761
          %v801 = vunpack.c.l.b16 %v762
          %v802 = vunpack.c.l.b16 %v763
          %v803 = vunpack.c.l.b16 %v764
          %v804 = vunpack.c.l.b16 %v765
          %v805 = vunpack.c.l.b16 %v766
          %v806 = vunpack.c.l.b16 %v767
          %v807 = vpack.c.b16 %v792, %v791
          %v808 = vpack.c.b16 %v794, %v793
          %v809 = vpack.c.b16 %v796, %v795
          %v810 = vpack.c.b16 %v798, %v797
          %v811 = vpack.c.b16 %v800, %v799
          %v812 = vpack.c.b16 %v802, %v801
          %v813 = vpack.c.b16 %v804, %v803
          %v814 = vpack.c.b16 %v806, %v805
          %823 = vmatprep.subr.bf16.mxu0 0
          %824 = vmatpush1.bf16.msra.mxu0 %v807
          %825 = vmatprep.subr.bf16.mxu0 0
          %826 = vmatpush1.bf16.msra.mxu0 %v808
          %827 = vmatprep.subr.bf16.mxu0 0
          %828 = vmatpush1.bf16.msra.mxu0 %v809
          %829 = vmatprep.subr.bf16.mxu0 0
          %830 = vmatpush1.bf16.msra.mxu0 %v810
          %831 = vmatprep.subr.bf16.mxu0 0
          %832 = vmatpush1.bf16.msra.mxu0 %v811
          %833 = vmatprep.subr.bf16.mxu0 0
          %834 = vmatpush1.bf16.msra.mxu0 %v812
          %835 = vmatprep.subr.bf16.mxu0 0
          %836 = vmatpush1.bf16.msra.mxu0 %v813
          %837 = vmatprep.subr.bf16.mxu0 0
          %838 = vmatpush1.bf16.msra.mxu0 %v814
          %839 = vmatprep.subr.bf16.mxu0 0
          %840 = vmatpush1.bf16.msra.mxu0 0
          %841 = vmatprep.subr.bf16.mxu0 0
          %842 = vmatpush1.bf16.msra.mxu0 0
          %843 = vmatprep.subr.bf16.mxu0 0
          %844 = vmatpush1.bf16.msra.mxu0 0
          %845 = vmatprep.subr.bf16.mxu0 0
          %846 = vmatpush1.bf16.msra.mxu0 0
          %847 = vmatprep.subr.bf16.mxu0 0
          %848 = vmatpush1.bf16.msra.mxu0 0
          %849 = vmatprep.subr.bf16.mxu0 0
          %850 = vmatpush1.bf16.msra.mxu0 0
          %851 = vmatprep.subr.bf16.mxu0 0
          %852 = vmatpush1.bf16.msra.mxu0 0
          %853 = vmatprep.subr.bf16.mxu0 0
          %854 = vmatpush1.bf16.msra.mxu0 0
          %855 = vmatprep.mubr.bf16.mxu0 0
          %856 = vmatmul.mubr.bf16.gmra.mrb[0].mxu0 %v744
          %v857 = vpop.f32.mrb[0].mxu0
          %v858 = vadd.f32 %v773, %v857
          %v859 = vpop.f32.mrb[0].mxu0
          %v860 = vpop.f32.mrb[0].mxu0
          %v861 = vadd.f32 %v773, %v860
          %v862 = vpop.f32.mrb[0].mxu0
          %863 = vmatprep.mubr.bf16.mxu0 0
          %864 = vmatmul.mubr.bf16.gmra.mrb[0].mxu0 %v745
          %v865 = vpop.f32.mrb[0].mxu0
          %v866 = vadd.f32 %v773, %v865
          %v867 = vpop.f32.mrb[0].mxu0
          %v868 = vpop.f32.mrb[0].mxu0
          %v869 = vadd.f32 %v773, %v868
          %v870 = vpop.f32.mrb[0].mxu0
          %871 = vmatprep.mubr.bf16.mxu0 0
          %872 = vmatmul.mubr.bf16.gmra.mrb[0].mxu0 %v746
          %v873 = vpop.f32.mrb[0].mxu0
          %v874 = vadd.f32 %v773, %v873
          %v875 = vpop.f32.mrb[0].mxu0
          %v876 = vpop.f32.mrb[0].mxu0
          %v877 = vadd.f32 %v773, %v876
          %v878 = vpop.f32.mrb[0].mxu0
          %879 = vmatprep.mubr.bf16.mxu0 0
          %880 = vmatmul.mubr.bf16.gmra.mrb[0].mxu0 %v747
          %v881 = vpop.f32.mrb[0].mxu0
          %v882 = vadd.f32 %v773, %v881
          %v883 = vpop.f32.mrb[0].mxu0
          %v884 = vpop.f32.mrb[0].mxu0
          %v885 = vadd.f32 %v773, %v884
          %v886 = vpop.f32.mrb[0].mxu0
          %887 = vmatprep.mubr.bf16.mxu0 0
          %888 = vmatmul.mubr.bf16.gmra.mrb[0].mxu0 %v748
          %v889 = vpop.f32.mrb[0].mxu0
          %v890 = vadd.f32 %v773, %v889
          %v891 = vpop.f32.mrb[0].mxu0
          %v892 = vpop.f32.mrb[0].mxu0
          %v893 = vadd.f32 %v773, %v892
          %v894 = vpop.f32.mrb[0].mxu0
          %895 = vmatprep.mubr.bf16.mxu0 0
          %896 = vmatmul.mubr.bf16.gmra.mrb[0].mxu0 %v749
          %v897 = vpop.f32.mrb[0].mxu0
          %v898 = vadd.f32 %v773, %v897
          %v899 = vpop.f32.mrb[0].mxu0
          %v900 = vpop.f32.mrb[0].mxu0
          %v901 = vadd.f32 %v773, %v900
          %v902 = vpop.f32.mrb[0].mxu0
          %903 = vmatprep.mubr.bf16.mxu0 0
          %904 = vmatmul.mubr.bf16.gmra.mrb[0].mxu0 %v750
          %v905 = vpop.f32.mrb[0].mxu0
          %v906 = vadd.f32 %v773, %v905
          %v907 = vpop.f32.mrb[0].mxu0
          %v908 = vpop.f32.mrb[0].mxu0
          %v909 = vadd.f32 %v773, %v908
          %v910 = vpop.f32.mrb[0].mxu0
          %911 = vmatprep.mubr.bf16.mxu0 0
          %912 = vmatmul.mubr.bf16.gmra.mrb[0].mxu0 %v751
          %v913 = vpop.f32.mrb[0].mxu0
          %v914 = vadd.f32 %v773, %v913
          %v915 = vpop.f32.mrb[0].mxu0
          %v916 = vpop.f32.mrb[0].mxu0
          %v917 = vadd.f32 %v773, %v916
          %v918 = vpop.f32.mrb[0].mxu0
          %919 = vdwg.mxu0
          %v920 = vld [vmem:[%s353] sm:$0xff]
          %v921 = vld [vmem:[%s353 + $0x8] sm:$0xff]
          %v922 = vld [vmem:[%s353 + $0x10] sm:$0xff]
          %v923 = vld [vmem:[%s353 + $0x18] sm:$0xff]
          %v924 = vld [vmem:[%s353 + $0x20] sm:$0xff]
          %v925 = vld [vmem:[%s353 + $0x28] sm:$0xff]
          %v926 = vld [vmem:[%s353 + $0x30] sm:$0xff]
          %v927 = vld [vmem:[%s353 + $0x38] sm:$0xff]
          %v928 = vld [vmem:[%s353 + $0x40] sm:$0xff]
          %v929 = vld [vmem:[%s353 + $0x48] sm:$0xff]
          %v930 = vld [vmem:[%s353 + $0x50] sm:$0xff]
          %v931 = vld [vmem:[%s353 + $0x58] sm:$0xff]
          %v932 = vld [vmem:[%s353 + $0x60] sm:$0xff]
          %v933 = vld [vmem:[%s353 + $0x68] sm:$0xff]
          %v934 = vld [vmem:[%s353 + $0x70] sm:$0xff]
          %v935 = vld [vmem:[%s353 + $0x78] sm:$0xff]
          %v936 = vmul.f32 %v858, %v920
          %v937 = vmul.f32 %v861, %v921
          %v938 = vmul.f32 %v866, %v922
          %v939 = vmul.f32 %v869, %v923
          %v940 = vmul.f32 %v874, %v924
          %v941 = vmul.f32 %v877, %v925
          %v942 = vmul.f32 %v882, %v926
          %v943 = vmul.f32 %v885, %v927
          %v944 = vmul.f32 %v890, %v928
          %v945 = vmul.f32 %v893, %v929
          %v946 = vmul.f32 %v898, %v930
          %v947 = vmul.f32 %v901, %v931
          %v948 = vmul.f32 %v906, %v932
          %v949 = vmul.f32 %v909, %v933
          %v950 = vmul.f32 %v914, %v934
          %v951 = vmul.f32 %v917, %v935
          %952 = vst [vmem:[%s359] sm:$0xff] %v936
          %953 = vst [vmem:[%s359 + $0x8] sm:$0xff] %v937
          %954 = vst [vmem:[%s359 + $0x10] sm:$0xff] %v938
          %955 = vst [vmem:[%s359 + $0x18] sm:$0xff] %v939
          %956 = vst [vmem:[%s359 + $0x20] sm:$0xff] %v940
          %957 = vst [vmem:[%s359 + $0x28] sm:$0xff] %v941
          %958 = vst [vmem:[%s359 + $0x30] sm:$0xff] %v942
          %959 = vst [vmem:[%s359 + $0x38] sm:$0xff] %v943
          %960 = vst [vmem:[%s359 + $0x40] sm:$0xff] %v944
          %961 = vst [vmem:[%s359 + $0x48] sm:$0xff] %v945
          %962 = vst [vmem:[%s359 + $0x50] sm:$0xff] %v946
          %963 = vst [vmem:[%s359 + $0x58] sm:$0xff] %v947
          %964 = vst [vmem:[%s359 + $0x60] sm:$0xff] %v948
          %965 = vst [vmem:[%s359 + $0x68] sm:$0xff] %v949
          %966 = vst [vmem:[%s359 + $0x70] sm:$0xff] %v950
          %967 = vst [vmem:[%s359 + $0x78] sm:$0xff] %v951
        $region94: #{gcn_nodeflow_forward.3} parent=77 // pred_fallthru
          _
        %s968 = smul.u32 16, %s21
        %p969 = scmp.lt.s32.totalorder %s968, 31
        %s970 = scalar_select %p969, %s968, 31
        %s971 = smul.addr %s970, 8
        %s972 = scalar_lea.vmem %s6, %s971
        // Predicated region
        $region95: #{gcn_nodeflow_forward.3} parent=77 // pred_check
          %p973 = pneg %p190
        $region96: #{gcn_nodeflow_forward.3} parent=77 // pred_check_branch
          %975 = sbr.rel (%p973) target = $region98
        $region97: #{gcn_nodeflow_forward.3} parent=77 // pred_region
          %s976 = smul.u32 16, %s21
        $region98: #{gcn_nodeflow_forward.3} parent=77 // pred_fallthru
          _
      $region78: #{gcn_nodeflow_forward.3} parent=5 // pred_fallthru
        _
      %p977 = scmp.le.s32.totalorder 2, %s12
      // Predicated region
      $region99: #{gcn_nodeflow_forward.3} parent=5 // pred_check
        %p978 = pneg %p977
      $region100: #{gcn_nodeflow_forward.3} parent=5 // pred_check_branch
        %980 = sbr.rel (%p978) target = $region102
      $region101: #{gcn_nodeflow_forward.3} parent=5 // pred_region
        %s981 = ssub.s32 %s12, 2
        // Predicated region
        $region103: #{gcn_nodeflow_forward.3} parent=101 // pred_check
          %p982 = pneg %p196
        $region104: #{gcn_nodeflow_forward.3} parent=101 // pred_check_branch
          %984 = sbr.rel (%p982) target = $region106
        $region105: #{gcn_nodeflow_forward.3} parent=101 // pred_region
          %s985 = smul.u32 16, %s23
          %p986 = scmp.lt.s32.totalorder %s985, 31
          %s987 = scalar_select %p986, %s985, 31
          %s988 = smul.addr %s987, 8
          %s989 = scalar_lea.vmem %s6, %s988
        $region106: #{gcn_nodeflow_forward.3} parent=101 // pred_fallthru
          _
      $region102: #{gcn_nodeflow_forward.3} parent=5 // pred_fallthru
        _
    $region6: #{gcn_nodeflow_forward.3} parent=1 // loop_footer
      %s16 = sadd.s32 1, %s12
    $region7: #{gcn_nodeflow_forward.3} parent=1 // loop_footer_branch
      %11 = sbr.rel target = $region3
    $region8: #{gcn_nodeflow_forward.3} parent=1 // loop_exit
      _

</llo_original>
